<compile_context>
chip_gen: v6e
topology: v6e:2x2x1
jax: 0.10.0
libtpu: 0.0.40
codegen_flags: <defaults>
</compile_context>

<pallas_src>
import math
import functools

import jax
import jax.numpy as jnp
from jax.experimental import pallas as pl
from jax.experimental.pallas import tpu as pltpu


# ----------------------------------------------------------------------------- helpers

def _round_up(x, m):
    return (x + m - 1) // m * m


def _layernorm(x, gamma, beta):
    # LayerNorm over last axis, eps = 1e-5 (PyTorch default), f32 math
    mean = jnp.mean(x, axis=-1, keepdims=True)
    var = jnp.mean((x - mean) ** 2, axis=-1, keepdims=True)
    return (x - mean) * jax.lax.rsqrt(var + 1e-5) * gamma + beta


# ----------------------------------------------------------------------------- fused kernel

def _transformer_kernel(x_ref, mask_ref,
                        inw_ref, inb_ref, ow_ref, ob_ref,
                        w1_ref, b1_ref, w2_ref, b2_ref,
                        g1_ref, bt1_ref, g2_ref, bt2_ref,
                        decw_ref, decb_ref,
                        o_ref,
                        x_scr,
                        *, H, hd, attn_scale):
    """Grid = (batch_tile, layer).  One invocation == one encoder layer applied to one
    batch element's [S, D] activation slab (post-norm, ReLU FFN, eval mode)."""
    l = pl.program_id(1)
    D = H * hd

    # first layer step of this batch tile: load (pre-scaled, pe-added) embeddings into carry
    @pl.when(l == 0)
    def _():
        x_scr[...] = x_ref[...]

    x = x_scr[...]                                                     # [S, D] f32
    mask = mask_ref[...]                                               # [S, S] additive

    # --- packed qkv projection: bf16 operands, f32 accumulation -------------------------
    qkv = (jnp.dot(x.astype(jnp.bfloat16), inw_ref[0],
                   preferred_element_type=jnp.float32) + inb_ref[0])   # [S, 3D] f32

    # --- multi-head self-attention (trace-time loop over H heads, no transposes) --------
    head_outs = []
    for h in range(H):
        q = qkv[:, h * hd:(h + 1) * hd].astype(jnp.bfloat16)                   # [S, hd]
        k = qkv[:, D + h * hd:D + (h + 1) * hd].astype(jnp.bfloat16)           # [S, hd]
        v = qkv[:, 2 * D + h * hd:2 * D + (h + 1) * hd].astype(jnp.bfloat16)   # [S, hd]
        # q @ k^T without materializing k.T (contract last dims on both operands)
        s = (jax.lax.dot_general(q, k, (((1,), (1,)), ((), ())),
                                 preferred_element_type=jnp.float32) * attn_scale
             + mask)                                                            # [S, S] f32
        s = s - jnp.max(s, axis=-1, keepdims=True)
        p = jnp.exp(s)
        p = p * pl.reciprocal(jnp.sum(p, axis=-1, keepdims=True), approx=True)
        head_outs.append(jnp.dot(p.astype(jnp.bfloat16), v,
                                 preferred_element_type=jnp.float32))           # [S, hd]
    attn = jnp.concatenate(head_outs, axis=-1)                                  # [S, D] f32

    a = (jnp.dot(attn.astype(jnp.bfloat16), ow_ref[0],
                 preferred_element_type=jnp.float32) + ob_ref[0])               # [S, D]

    # --- add & norm 1 --------------------------------------------------------------------
    y = _layernorm(x + a, g1_ref[0], bt1_ref[0])

    # --- feed-forward (ReLU) ---------------------------------------------------------------
    hmid = jnp.maximum(jnp.dot(y.astype(jnp.bfloat16), w1_ref[0],
                               preferred_element_type=jnp.float32) + b1_ref[0], 0.0)
    f = (jnp.dot(hmid.astype(jnp.bfloat16), w2_ref[0],
                 preferred_element_type=jnp.float32) + b2_ref[0])

    # --- add & norm 2 ----------------------------------------------------------------------
    z = _layernorm(y + f, g2_ref[0], bt2_ref[0])

    x_scr[...] = z                                                     # carry to next layer

    # --- last layer: fused decoder projection into a lane-dense (padded) vocab slab --------
    @pl.when(l == pl.num_programs(1) - 1)
    def _():
        o_ref[...] = (jnp.dot(z.astype(jnp.bfloat16), decw_ref[...],
                              preferred_element_type=jnp.float32) + decb_ref[...])


# ----------------------------------------------------------------------------- params

def init_params(key, ntoken, d_model, nhead, d_hid, nlayers, max_len=64):
    D, Dh, L = d_model, d_hid, nlayers
    ks = jax.random.split(key, 6)
    initrange = 0.1
    s_attn = 1.0 / math.sqrt(D)
    s_ff = 1.0 / math.sqrt(Dh)
    NT_PAD = _round_up(ntoken, 128)

    def u(k, shape, bound, dtype=jnp.float32):
        return jax.random.uniform(k, shape, jnp.float32, -bound, bound).astype(dtype)

    # sinusoidal positional-encoding table (same formula as the PyTorch module)
    position = jnp.arange(max_len, dtype=jnp.float32)[:, None]
    div_term = jnp.exp(jnp.arange(0, D, 2, dtype=jnp.float32)
                       * (-math.log(10000.0) / D))
    pe = jnp.zeros((max_len, 1, D), jnp.float32)
    pe = pe.at[:, 0, 0::2].set(jnp.sin(position * div_term))
    pe = pe.at[:, 0, 1::2].set(jnp.cos(position * div_term))

    # decoder weight: pre-transposed ([D, vocab]), lane-dense padded, bf16 — done ONCE here
    dec_w = jax.random.uniform(ks[1], (ntoken, D), jnp.float32, -initrange, initrange)
    dec_w = jnp.pad(dec_w.T, ((0, 0), (0, NT_PAD - ntoken))).astype(jnp.bfloat16)
    dec_b = jnp.zeros((1, NT_PAD), jnp.float32)

    return {
        "emb":   u(ks[0], (ntoken, D), initrange),     # f32 (gathered in XLA wrapper)
        "pe":    pe,                                   # f32
        "dec_w": dec_w,                                # [D, NT_PAD] bf16
        "dec_b": dec_b,                                # [1, NT_PAD] f32
        # per-layer weights stacked on a leading L axis, pre-transposed ([in, out]),
        # matmul weights stored in bf16 (MXU-native), biases / LN params in f32.
        "inw": u(ks[2], (L, D, 3 * D), s_attn, jnp.bfloat16),   # packed q|k|v projection
        "inb": jnp.zeros((L, 1, 3 * D), jnp.float32),
        "ow":  u(ks[3], (L, D, D), s_attn, jnp.bfloat16),
        "ob":  jnp.zeros((L, 1, D), jnp.float32),
        "w1":  u(ks[4], (L, D, Dh), s_attn, jnp.bfloat16),
        "b1":  jnp.zeros((L, 1, Dh), jnp.float32),
        "w2":  u(ks[5], (L, Dh, D), s_ff, jnp.bfloat16),
        "b2":  jnp.zeros((L, 1, D), jnp.float32),
        "g1":  jnp.ones((L, 1, D), jnp.float32),
        "bt1": jnp.zeros((L, 1, D), jnp.float32),
        "g2":  jnp.ones((L, 1, D), jnp.float32),
        "bt2": jnp.zeros((L, 1, D), jnp.float32),
    }


# ----------------------------------------------------------------------------- forward

@functools.partial(jax.jit, static_argnames=("d_model", "nhead", "ntoken"))
def transformer_forward(params, src, src_mask, *, d_model, nhead, ntoken):
    # src: [S, B] int32 tokens, src_mask: [S, S] additive float mask
    S, B = src.shape
    D, H = d_model, nhead
    hd = D // H
    L = params["inw"].shape[0]
    Dh = params["w1"].shape[-1]
    NT_PAD = params["dec_w"].shape[-1]

    # embedding gather + sqrt(d_model) scale + positional encoding, fused in XLA,
    # batch-major row order (row = b*S + s) so each grid batch-tile is a contiguous slab.
    emb = jnp.take(params["emb"], src.T.reshape(-1), axis=0)                    # [B*S, D]
    x = (emb.reshape(B, S, D) * math.sqrt(D) + params["pe"][:S, 0, :]).reshape(B * S, D)

    kernel = functools.partial(_transformer_kernel, H=H, hd=hd,
                               attn_scale=1.0 / math.sqrt(hd))

    per_layer = lambda shape: pl.BlockSpec((1,) + shape, lambda b, l: (l, 0, 0))
    const2 = lambda shape: pl.BlockSpec(shape, lambda b, l: (0, 0))
    per_tile = lambda shape: pl.BlockSpec(shape, lambda b, l: (b, 0))

    out = pl.pallas_call(
        kernel,
        out_shape=jax.ShapeDtypeStruct((B * S, NT_PAD), jnp.float32),
        grid_spec=pltpu.PrefetchScalarGridSpec(
            num_scalar_prefetch=0,
            grid=(B, L),                    # (batch tile, layer)
            in_specs=[
                per_tile((S, D)),           # x (read at layer 0 of each batch tile)
                const2((S, S)),             # additive attention mask
                per_layer((D, 3 * D)),      # in_proj weight (bf16)
                per_layer((1, 3 * D)),      # in_proj bias
                per_layer((D, D)),          # out_proj weight (bf16)
                per_layer((1, D)),          # out_proj bias
                per_layer((D, Dh)),         # ffn lin1 weight (bf16)
                per_layer((1, Dh)),         # ffn lin1 bias
                per_layer((Dh, D)),         # ffn lin2 weight (bf16)
                per_layer((1, D)),          # ffn lin2 bias
                per_layer((1, D)),          # ln1 gamma
                per_layer((1, D)),          # ln1 beta
                per_layer((1, D)),          # ln2 gamma
                per_layer((1, D)),          # ln2 beta
                const2((D, NT_PAD)),        # decoder weight (bf16, padded, lane-dense)
                const2((1, NT_PAD)),        # decoder bias (padded)
            ],
            out_specs=pl.BlockSpec((S, NT_PAD), lambda b, l: (b, 0)),
            scratch_shapes=[
                pltpu.VMEM((S, D), jnp.float32),   # activation carried across layers
            ]),
        compiler_params=pltpu.CompilerParams(
            # batch tiles are independent -> "parallel" (v7x megacore); layer carry in
            # x_scr requires the layer axis to stay sequential -> "arbitrary".
            dimension_semantics=("parallel", "arbitrary"),
            vmem_limit_bytes=32 * 1024 * 1024),
    )(x, src_mask,
      params["inw"], params["inb"], params["ow"], params["ob"],
      params["w1"], params["b1"], params["w2"], params["b2"],
      params["g1"], params["bt1"], params["g2"], params["bt2"],
      params["dec_w"], params["dec_b"])

    # drop lane padding, back to PyTorch [S, B, ntoken] layout
    return out[:, :ntoken].reshape(B, S, ntoken).transpose(1, 0, 2)


# ----------------------------------------------------------------------------- main

if __name__ == "__main__":
    ntoken, d_model, nhead, d_hid, nlayers = 50, 32, 4, 64, 2
    seq_len, batch = 8, 2

    key = jax.random.PRNGKey(0)
    pkey, skey = jax.random.split(key)
    params = init_params(pkey, ntoken, d_model, nhead, d_hid, nlayers)

    src = jax.random.randint(skey, (seq_len, batch), 0, ntoken, dtype=jnp.int32)
    # causal additive float mask, same semantics as generate_square_subsequent_mask
    src_mask = jnp.where(jnp.tril(jnp.ones((seq_len, seq_len), dtype=bool)),
                         0.0, -jnp.inf).astype(jnp.float32)

    out = transformer_forward(params, src, src_mask,
                              d_model=d_model, nhead=nhead, ntoken=ntoken)
    out = jax.block_until_ready(out)
    assert out.shape == (seq_len, batch, ntoken)
    assert bool(jnp.all(jnp.isfinite(out)))
    print("KERNEL_OK")
</pallas_src>

<mosaic_0001>
module attributes {stable_mosaic.version = 11 : i64} {
  func.func @_transformer_kernel(%arg0: i32, %arg1: i32, %arg2: memref<8x32xf32, #tpu.memory_space<vmem>>, %arg3: memref<8x8xf32, #tpu.memory_space<vmem>>, %arg4: memref<1x32x96xbf16, #tpu.memory_space<vmem>>, %arg5: memref<1x1x96xf32, #tpu.memory_space<vmem>>, %arg6: memref<1x32x32xbf16, #tpu.memory_space<vmem>>, %arg7: memref<1x1x32xf32, #tpu.memory_space<vmem>>, %arg8: memref<1x32x64xbf16, #tpu.memory_space<vmem>>, %arg9: memref<1x1x64xf32, #tpu.memory_space<vmem>>, %arg10: memref<1x64x32xbf16, #tpu.memory_space<vmem>>, %arg11: memref<1x1x32xf32, #tpu.memory_space<vmem>>, %arg12: memref<1x1x32xf32, #tpu.memory_space<vmem>>, %arg13: memref<1x1x32xf32, #tpu.memory_space<vmem>>, %arg14: memref<1x1x32xf32, #tpu.memory_space<vmem>>, %arg15: memref<1x1x32xf32, #tpu.memory_space<vmem>>, %arg16: memref<32x128xbf16, #tpu.memory_space<vmem>>, %arg17: memref<1x128xf32, #tpu.memory_space<vmem>>, %arg18: memref<8x128xf32, #tpu.memory_space<vmem>>, %arg19: memref<8x32xf32, #tpu.memory_space<vmem>>) attributes {dimension_semantics = [#tpu.dimension_semantics<parallel>, #tpu.dimension_semantics<arbitrary>], iteration_bounds = array<i64: 2, 2>, scalar_prefetch = 0 : i64, scratch_operands = 1 : i64, tpu.core_type = #tpu.core_type<tc>, window_params = [{transform_indices = @transform_0, window_bounds = array<i64: 8, 32>}, {pipeline_mode = #tpu.pipeline_mode<synchronous>, transform_indices = @transform_1, window_bounds = array<i64: 8, 8>}, {transform_indices = @transform_2, window_bounds = array<i64: 1, 32, 96>}, {transform_indices = @transform_3, window_bounds = array<i64: 1, 1, 96>}, {transform_indices = @transform_4, window_bounds = array<i64: 1, 32, 32>}, {transform_indices = @transform_5, window_bounds = array<i64: 1, 1, 32>}, {transform_indices = @transform_6, window_bounds = array<i64: 1, 32, 64>}, {transform_indices = @transform_7, window_bounds = array<i64: 1, 1, 64>}, {transform_indices = @transform_8, window_bounds = array<i64: 1, 64, 32>}, {transform_indices = @transform_9, window_bounds = array<i64: 1, 1, 32>}, {transform_indices = @transform_10, window_bounds = array<i64: 1, 1, 32>}, {transform_indices = @transform_11, window_bounds = array<i64: 1, 1, 32>}, {transform_indices = @transform_12, window_bounds = array<i64: 1, 1, 32>}, {transform_indices = @transform_13, window_bounds = array<i64: 1, 1, 32>}, {pipeline_mode = #tpu.pipeline_mode<synchronous>, transform_indices = @transform_14, window_bounds = array<i64: 32, 128>}, {pipeline_mode = #tpu.pipeline_mode<synchronous>, transform_indices = @transform_15, window_bounds = array<i64: 1, 128>}, {transform_indices = @transform_16, window_bounds = array<i64: 8, 128>}]} {
    %c0_i32 = arith.constant 0 : i32
    %0 = arith.cmpi eq, %arg1, %c0_i32 : i32
    %1 = arith.extui %0 : i1 to i32
    %c0_i32_0 = arith.constant 0 : i32
    %2 = arith.cmpi ne, %1, %c0_i32_0 : i32
    scf.if %2 {
      %c0_77 = arith.constant 0 : index
      %c0_78 = arith.constant 0 : index
      %186 = vector.load %arg2[%c0_77, %c0_78] : memref<8x32xf32, #tpu.memory_space<vmem>>, vector<8x32xf32>
      %c0_79 = arith.constant 0 : index
      %c0_80 = arith.constant 0 : index
      %187 = vector.load %arg19[%c0_79, %c0_80] : memref<8x32xf32, #tpu.memory_space<vmem>>, vector<8x32xf32>
      tpu.vector_store %arg19[%c0_79, %c0_80], %186 {strides = array<i32>} : memref<8x32xf32, #tpu.memory_space<vmem>>, vector<8x32xf32>,
    } else {
    }
    %c0 = arith.constant 0 : index
    %c0_1 = arith.constant 0 : index
    %3 = vector.load %arg19[%c0, %c0_1] : memref<8x32xf32, #tpu.memory_space<vmem>>, vector<8x32xf32>
    %c0_2 = arith.constant 0 : index
    %c0_3 = arith.constant 0 : index
    %4 = vector.load %arg3[%c0_2, %c0_3] : memref<8x8xf32, #tpu.memory_space<vmem>>, vector<8x8xf32>
    %5 = arith.truncf %3 : vector<8x32xf32> to vector<8x32xbf16>
    %c0_4 = arith.constant 0 : index
    %c0_5 = arith.constant 0 : index
    %c0_6 = arith.constant 0 : index
    %6 = vector.load %arg4[%c0_4, %c0_5, %c0_6] : memref<1x32x96xbf16, #tpu.memory_space<vmem>>, vector<1x32x96xbf16>
    %7 = vector.shape_cast %6 : vector<1x32x96xbf16> to vector<32x96xbf16>
    %cst = arith.constant dense<0.000000e+00> : vector<8x96xf32>
    %8 = tpu.matmul %5, %7, %cst {dimension_numbers = #tpu.dot_dimension_numbers<[1], [0], [0], [1], [0, 0, 1, 1], [], []>} : vector<8x32xbf16>, vector<32x96xbf16>, vector<8x96xf32> -> vector<8x96xf32>
    %c0_7 = arith.constant 0 : index
    %c0_8 = arith.constant 0 : index
    %c0_9 = arith.constant 0 : index
    %9 = vector.load %arg5[%c0_7, %c0_8, %c0_9] : memref<1x1x96xf32, #tpu.memory_space<vmem>>, vector<1x1x96xf32>
    %10 = vector.shape_cast %9 : vector<1x1x96xf32> to vector<1x96xf32>
    %11 = vector.broadcast %10 : vector<1x96xf32> to vector<8x96xf32>
    %12 = arith.addf %8, %11 : vector<8x96xf32>
    %13 = vector.extract_strided_slice %12 {offsets = [0, 0], sizes = [8, 8], strides = [1, 1]} : vector<8x96xf32> to vector<8x8xf32>
    %14 = arith.truncf %13 : vector<8x8xf32> to vector<8x8xbf16>
    %15 = vector.extract_strided_slice %12 {offsets = [0, 32], sizes = [8, 8], strides = [1, 1]} : vector<8x96xf32> to vector<8x8xf32>
    %16 = arith.truncf %15 : vector<8x8xf32> to vector<8x8xbf16>
    %17 = vector.extract_strided_slice %12 {offsets = [0, 64], sizes = [8, 8], strides = [1, 1]} : vector<8x96xf32> to vector<8x8xf32>
    %18 = arith.truncf %17 : vector<8x8xf32> to vector<8x8xbf16>
    %cst_10 = arith.constant dense<0.000000e+00> : vector<8x8xf32>
    %19 = tpu.matmul %14, %16, %cst_10 {dimension_numbers = #tpu.dot_dimension_numbers<[1], [1], [0], [0], [0, 0, 1, 0], [], []>} : vector<8x8xbf16>, vector<8x8xbf16>, vector<8x8xf32> -> vector<8x8xf32>
    %cst_11 = arith.constant 0.353553385 : f32
    %20 = vector.broadcast %cst_11 : f32 to vector<8x8xf32>
    %21 = arith.mulf %19, %20 : vector<8x8xf32>
    %22 = arith.addf %21, %4 : vector<8x8xf32>
    %cst_12 = arith.constant dense<0xFF800000> : vector<8xf32>
    %23 = vector.multi_reduction <maximumf>, %22, %cst_12 [1] : vector<8x8xf32> to vector<8xf32>
    %24 = vector.shape_cast %23 : vector<8xf32> to vector<8x1xf32>
    %25 = vector.broadcast %24 : vector<8x1xf32> to vector<8x8xf32>
    %26 = arith.subf %22, %25 : vector<8x8xf32>
    %27 = math.exp %26 : vector<8x8xf32>
    %cst_13 = arith.constant dense<0.000000e+00> : vector<8xf32>
    %28 = vector.multi_reduction <add>, %27, %cst_13 [1] : vector<8x8xf32> to vector<8xf32>
    %29 = vector.shape_cast %28 : vector<8xf32> to vector<8x1xf32>
    %30 = tpu.reciprocal %29 {approx = true} : vector<8x1xf32> -> vector<8x1xf32>
    %31 = vector.broadcast %30 : vector<8x1xf32> to vector<8x8xf32>
    %32 = arith.mulf %27, %31 : vector<8x8xf32>
    %33 = arith.truncf %32 : vector<8x8xf32> to vector<8x8xbf16>
    %cst_14 = arith.constant dense<0.000000e+00> : vector<8x8xf32>
    %34 = tpu.matmul %33, %18, %cst_14 {dimension_numbers = #tpu.dot_dimension_numbers<[1], [0], [0], [1], [0, 0, 1, 1], [], []>} : vector<8x8xbf16>, vector<8x8xbf16>, vector<8x8xf32> -> vector<8x8xf32>
    %35 = vector.extract_strided_slice %12 {offsets = [0, 8], sizes = [8, 8], strides = [1, 1]} : vector<8x96xf32> to vector<8x8xf32>
    %36 = arith.truncf %35 : vector<8x8xf32> to vector<8x8xbf16>
    %37 = vector.extract_strided_slice %12 {offsets = [0, 40], sizes = [8, 8], strides = [1, 1]} : vector<8x96xf32> to vector<8x8xf32>
    %38 = arith.truncf %37 : vector<8x8xf32> to vector<8x8xbf16>
    %39 = vector.extract_strided_slice %12 {offsets = [0, 72], sizes = [8, 8], strides = [1, 1]} : vector<8x96xf32> to vector<8x8xf32>
    %40 = arith.truncf %39 : vector<8x8xf32> to vector<8x8xbf16>
    %cst_15 = arith.constant dense<0.000000e+00> : vector<8x8xf32>
    %41 = tpu.matmul %36, %38, %cst_15 {dimension_numbers = #tpu.dot_dimension_numbers<[1], [1], [0], [0], [0, 0, 1, 0], [], []>} : vector<8x8xbf16>, vector<8x8xbf16>, vector<8x8xf32> -> vector<8x8xf32>
    %cst_16 = arith.constant 0.353553385 : f32
    %42 = vector.broadcast %cst_16 : f32 to vector<8x8xf32>
    %43 = arith.mulf %41, %42 : vector<8x8xf32>
    %44 = arith.addf %43, %4 : vector<8x8xf32>
    %cst_17 = arith.constant dense<0xFF800000> : vector<8xf32>
    %45 = vector.multi_reduction <maximumf>, %44, %cst_17 [1] : vector<8x8xf32> to vector<8xf32>
    %46 = vector.shape_cast %45 : vector<8xf32> to vector<8x1xf32>
    %47 = vector.broadcast %46 : vector<8x1xf32> to vector<8x8xf32>
    %48 = arith.subf %44, %47 : vector<8x8xf32>
    %49 = math.exp %48 : vector<8x8xf32>
    %cst_18 = arith.constant dense<0.000000e+00> : vector<8xf32>
    %50 = vector.multi_reduction <add>, %49, %cst_18 [1] : vector<8x8xf32> to vector<8xf32>
    %51 = vector.shape_cast %50 : vector<8xf32> to vector<8x1xf32>
    %52 = tpu.reciprocal %51 {approx = true} : vector<8x1xf32> -> vector<8x1xf32>
    %53 = vector.broadcast %52 : vector<8x1xf32> to vector<8x8xf32>
    %54 = arith.mulf %49, %53 : vector<8x8xf32>
    %55 = arith.truncf %54 : vector<8x8xf32> to vector<8x8xbf16>
    %cst_19 = arith.constant dense<0.000000e+00> : vector<8x8xf32>
    %56 = tpu.matmul %55, %40, %cst_19 {dimension_numbers = #tpu.dot_dimension_numbers<[1], [0], [0], [1], [0, 0, 1, 1], [], []>} : vector<8x8xbf16>, vector<8x8xbf16>, vector<8x8xf32> -> vector<8x8xf32>
    %57 = vector.extract_strided_slice %12 {offsets = [0, 16], sizes = [8, 8], strides = [1, 1]} : vector<8x96xf32> to vector<8x8xf32>
    %58 = arith.truncf %57 : vector<8x8xf32> to vector<8x8xbf16>
    %59 = vector.extract_strided_slice %12 {offsets = [0, 48], sizes = [8, 8], strides = [1, 1]} : vector<8x96xf32> to vector<8x8xf32>
    %60 = arith.truncf %59 : vector<8x8xf32> to vector<8x8xbf16>
    %61 = vector.extract_strided_slice %12 {offsets = [0, 80], sizes = [8, 8], strides = [1, 1]} : vector<8x96xf32> to vector<8x8xf32>
    %62 = arith.truncf %61 : vector<8x8xf32> to vector<8x8xbf16>
    %cst_20 = arith.constant dense<0.000000e+00> : vector<8x8xf32>
    %63 = tpu.matmul %58, %60, %cst_20 {dimension_numbers = #tpu.dot_dimension_numbers<[1], [1], [0], [0], [0, 0, 1, 0], [], []>} : vector<8x8xbf16>, vector<8x8xbf16>, vector<8x8xf32> -> vector<8x8xf32>
    %cst_21 = arith.constant 0.353553385 : f32
    %64 = vector.broadcast %cst_21 : f32 to vector<8x8xf32>
    %65 = arith.mulf %63, %64 : vector<8x8xf32>
    %66 = arith.addf %65, %4 : vector<8x8xf32>
    %cst_22 = arith.constant dense<0xFF800000> : vector<8xf32>
    %67 = vector.multi_reduction <maximumf>, %66, %cst_22 [1] : vector<8x8xf32> to vector<8xf32>
    %68 = vector.shape_cast %67 : vector<8xf32> to vector<8x1xf32>
    %69 = vector.broadcast %68 : vector<8x1xf32> to vector<8x8xf32>
    %70 = arith.subf %66, %69 : vector<8x8xf32>
    %71 = math.exp %70 : vector<8x8xf32>
    %cst_23 = arith.constant dense<0.000000e+00> : vector<8xf32>
    %72 = vector.multi_reduction <add>, %71, %cst_23 [1] : vector<8x8xf32> to vector<8xf32>
    %73 = vector.shape_cast %72 : vector<8xf32> to vector<8x1xf32>
    %74 = tpu.reciprocal %73 {approx = true} : vector<8x1xf32> -> vector<8x1xf32>
    %75 = vector.broadcast %74 : vector<8x1xf32> to vector<8x8xf32>
    %76 = arith.mulf %71, %75 : vector<8x8xf32>
    %77 = arith.truncf %76 : vector<8x8xf32> to vector<8x8xbf16>
    %cst_24 = arith.constant dense<0.000000e+00> : vector<8x8xf32>
    %78 = tpu.matmul %77, %62, %cst_24 {dimension_numbers = #tpu.dot_dimension_numbers<[1], [0], [0], [1], [0, 0, 1, 1], [], []>} : vector<8x8xbf16>, vector<8x8xbf16>, vector<8x8xf32> -> vector<8x8xf32>
    %79 = vector.extract_strided_slice %12 {offsets = [0, 24], sizes = [8, 8], strides = [1, 1]} : vector<8x96xf32> to vector<8x8xf32>
    %80 = arith.truncf %79 : vector<8x8xf32> to vector<8x8xbf16>
    %81 = vector.extract_strided_slice %12 {offsets = [0, 56], sizes = [8, 8], strides = [1, 1]} : vector<8x96xf32> to vector<8x8xf32>
    %82 = arith.truncf %81 : vector<8x8xf32> to vector<8x8xbf16>
    %83 = vector.extract_strided_slice %12 {offsets = [0, 88], sizes = [8, 8], strides = [1, 1]} : vector<8x96xf32> to vector<8x8xf32>
    %84 = arith.truncf %83 : vector<8x8xf32> to vector<8x8xbf16>
    %cst_25 = arith.constant dense<0.000000e+00> : vector<8x8xf32>
    %85 = tpu.matmul %80, %82, %cst_25 {dimension_numbers = #tpu.dot_dimension_numbers<[1], [1], [0], [0], [0, 0, 1, 0], [], []>} : vector<8x8xbf16>, vector<8x8xbf16>, vector<8x8xf32> -> vector<8x8xf32>
    %cst_26 = arith.constant 0.353553385 : f32
    %86 = vector.broadcast %cst_26 : f32 to vector<8x8xf32>
    %87 = arith.mulf %85, %86 : vector<8x8xf32>
    %88 = arith.addf %87, %4 : vector<8x8xf32>
    %cst_27 = arith.constant dense<0xFF800000> : vector<8xf32>
    %89 = vector.multi_reduction <maximumf>, %88, %cst_27 [1] : vector<8x8xf32> to vector<8xf32>
    %90 = vector.shape_cast %89 : vector<8xf32> to vector<8x1xf32>
    %91 = vector.broadcast %90 : vector<8x1xf32> to vector<8x8xf32>
    %92 = arith.subf %88, %91 : vector<8x8xf32>
    %93 = math.exp %92 : vector<8x8xf32>
    %cst_28 = arith.constant dense<0.000000e+00> : vector<8xf32>
    %94 = vector.multi_reduction <add>, %93, %cst_28 [1] : vector<8x8xf32> to vector<8xf32>
    %95 = vector.shape_cast %94 : vector<8xf32> to vector<8x1xf32>
    %96 = tpu.reciprocal %95 {approx = true} : vector<8x1xf32> -> vector<8x1xf32>
    %97 = vector.broadcast %96 : vector<8x1xf32> to vector<8x8xf32>
    %98 = arith.mulf %93, %97 : vector<8x8xf32>
    %99 = arith.truncf %98 : vector<8x8xf32> to vector<8x8xbf16>
    %cst_29 = arith.constant dense<0.000000e+00> : vector<8x8xf32>
    %100 = tpu.matmul %99, %84, %cst_29 {dimension_numbers = #tpu.dot_dimension_numbers<[1], [0], [0], [1], [0, 0, 1, 1], [], []>} : vector<8x8xbf16>, vector<8x8xbf16>, vector<8x8xf32> -> vector<8x8xf32>
    %101 = tpu.concatenate %34, %56, %78, %100 in 1 : vector<8x8xf32>, vector<8x8xf32>, vector<8x8xf32>, vector<8x8xf32> -> vector<8x32xf32>
    %102 = arith.truncf %101 : vector<8x32xf32> to vector<8x32xbf16>
    %c0_30 = arith.constant 0 : index
    %c0_31 = arith.constant 0 : index
    %c0_32 = arith.constant 0 : index
    %103 = vector.load %arg6[%c0_30, %c0_31, %c0_32] : memref<1x32x32xbf16, #tpu.memory_space<vmem>>, vector<1x32x32xbf16>
    %104 = vector.shape_cast %103 : vector<1x32x32xbf16> to vector<32x32xbf16>
    %cst_33 = arith.constant dense<0.000000e+00> : vector<8x32xf32>
    %105 = tpu.matmul %102, %104, %cst_33 {dimension_numbers = #tpu.dot_dimension_numbers<[1], [0], [0], [1], [0, 0, 1, 1], [], []>} : vector<8x32xbf16>, vector<32x32xbf16>, vector<8x32xf32> -> vector<8x32xf32>
    %c0_34 = arith.constant 0 : index
    %c0_35 = arith.constant 0 : index
    %c0_36 = arith.constant 0 : index
    %106 = vector.load %arg7[%c0_34, %c0_35, %c0_36] : memref<1x1x32xf32, #tpu.memory_space<vmem>>, vector<1x1x32xf32>
    %107 = vector.shape_cast %106 : vector<1x1x32xf32> to vector<1x32xf32>
    %108 = vector.broadcast %107 : vector<1x32xf32> to vector<8x32xf32>
    %109 = arith.addf %105, %108 : vector<8x32xf32>
    %110 = arith.addf %3, %109 : vector<8x32xf32>
    %c0_37 = arith.constant 0 : index
    %c0_38 = arith.constant 0 : index
    %c0_39 = arith.constant 0 : index
    %111 = vector.load %arg12[%c0_37, %c0_38, %c0_39] : memref<1x1x32xf32, #tpu.memory_space<vmem>>, vector<1x1x32xf32>
    %112 = vector.shape_cast %111 : vector<1x1x32xf32> to vector<1x32xf32>
    %c0_40 = arith.constant 0 : index
    %c0_41 = arith.constant 0 : index
    %c0_42 = arith.constant 0 : index
    %113 = vector.load %arg13[%c0_40, %c0_41, %c0_42] : memref<1x1x32xf32, #tpu.memory_space<vmem>>, vector<1x1x32xf32>
    %114 = vector.shape_cast %113 : vector<1x1x32xf32> to vector<1x32xf32>
    %cst_43 = arith.constant dense<0.000000e+00> : vector<8xf32>
    %115 = vector.multi_reduction <add>, %110, %cst_43 [1] : vector<8x32xf32> to vector<8xf32>
    %116 = vector.shape_cast %115 : vector<8xf32> to vector<8x1xf32>
    %cst_44 = arith.constant 3.200000e+01 : f32
    %117 = vector.broadcast %cst_44 : f32 to vector<8x1xf32>
    %118 = arith.divf %116, %117 : vector<8x1xf32>
    %119 = vector.broadcast %118 : vector<8x1xf32> to vector<8x32xf32>
    %120 = arith.subf %110, %119 : vector<8x32xf32>
    %121 = arith.mulf %120, %120 : vector<8x32xf32>
    %cst_45 = arith.constant dense<0.000000e+00> : vector<8xf32>
    %122 = vector.multi_reduction <add>, %121, %cst_45 [1] : vector<8x32xf32> to vector<8xf32>
    %123 = vector.shape_cast %122 : vector<8xf32> to vector<8x1xf32>
    %cst_46 = arith.constant 3.200000e+01 : f32
    %124 = vector.broadcast %cst_46 : f32 to vector<8x1xf32>
    %125 = arith.divf %123, %124 : vector<8x1xf32>
    %126 = vector.broadcast %118 : vector<8x1xf32> to vector<8x32xf32>
    %127 = arith.subf %110, %126 : vector<8x32xf32>
    %cst_47 = arith.constant 9.99999974E-6 : f32
    %128 = vector.broadcast %cst_47 : f32 to vector<8x1xf32>
    %129 = arith.addf %125, %128 : vector<8x1xf32>
    %130 = math.rsqrt %129 : vector<8x1xf32>
    %131 = vector.broadcast %130 : vector<8x1xf32> to vector<8x32xf32>
    %132 = arith.mulf %127, %131 : vector<8x32xf32>
    %133 = vector.broadcast %112 : vector<1x32xf32> to vector<8x32xf32>
    %134 = arith.mulf %132, %133 : vector<8x32xf32>
    %135 = vector.broadcast %114 : vector<1x32xf32> to vector<8x32xf32>
    %136 = arith.addf %134, %135 : vector<8x32xf32>
    %137 = arith.truncf %136 : vector<8x32xf32> to vector<8x32xbf16>
    %c0_48 = arith.constant 0 : index
    %c0_49 = arith.constant 0 : index
    %c0_50 = arith.constant 0 : index
    %138 = vector.load %arg8[%c0_48, %c0_49, %c0_50] : memref<1x32x64xbf16, #tpu.memory_space<vmem>>, vector<1x32x64xbf16>
    %139 = vector.shape_cast %138 : vector<1x32x64xbf16> to vector<32x64xbf16>
    %cst_51 = arith.constant dense<0.000000e+00> : vector<8x64xf32>
    %140 = tpu.matmul %137, %139, %cst_51 {dimension_numbers = #tpu.dot_dimension_numbers<[1], [0], [0], [1], [0, 0, 1, 1], [], []>} : vector<8x32xbf16>, vector<32x64xbf16>, vector<8x64xf32> -> vector<8x64xf32>
    %c0_52 = arith.constant 0 : index
    %c0_53 = arith.constant 0 : index
    %c0_54 = arith.constant 0 : index
    %141 = vector.load %arg9[%c0_52, %c0_53, %c0_54] : memref<1x1x64xf32, #tpu.memory_space<vmem>>, vector<1x1x64xf32>
    %142 = vector.shape_cast %141 : vector<1x1x64xf32> to vector<1x64xf32>
    %143 = vector.broadcast %142 : vector<1x64xf32> to vector<8x64xf32>
    %144 = arith.addf %140, %143 : vector<8x64xf32>
    %cst_55 = arith.constant 0.000000e+00 : f32
    %145 = vector.broadcast %cst_55 : f32 to vector<8x64xf32>
    %146 = arith.maximumf %144, %145 : vector<8x64xf32>
    %147 = arith.truncf %146 : vector<8x64xf32> to vector<8x64xbf16>
    %c0_56 = arith.constant 0 : index
    %c0_57 = arith.constant 0 : index
    %c0_58 = arith.constant 0 : index
    %148 = vector.load %arg10[%c0_56, %c0_57, %c0_58] : memref<1x64x32xbf16, #tpu.memory_space<vmem>>, vector<1x64x32xbf16>
    %149 = vector.shape_cast %148 : vector<1x64x32xbf16> to vector<64x32xbf16>
    %cst_59 = arith.constant dense<0.000000e+00> : vector<8x32xf32>
    %150 = tpu.matmul %147, %149, %cst_59 {dimension_numbers = #tpu.dot_dimension_numbers<[1], [0], [0], [1], [0, 0, 1, 1], [], []>} : vector<8x64xbf16>, vector<64x32xbf16>, vector<8x32xf32> -> vector<8x32xf32>
    %c0_60 = arith.constant 0 : index
    %c0_61 = arith.constant 0 : index
    %c0_62 = arith.constant 0 : index
    %151 = vector.load %arg11[%c0_60, %c0_61, %c0_62] : memref<1x1x32xf32, #tpu.memory_space<vmem>>, vector<1x1x32xf32>
    %152 = vector.shape_cast %151 : vector<1x1x32xf32> to vector<1x32xf32>
    %153 = vector.broadcast %152 : vector<1x32xf32> to vector<8x32xf32>
    %154 = arith.addf %150, %153 : vector<8x32xf32>
    %155 = arith.addf %136, %154 : vector<8x32xf32>
    %c0_63 = arith.constant 0 : index
    %c0_64 = arith.constant 0 : index
    %c0_65 = arith.constant 0 : index
    %156 = vector.load %arg14[%c0_63, %c0_64, %c0_65] : memref<1x1x32xf32, #tpu.memory_space<vmem>>, vector<1x1x32xf32>
    %157 = vector.shape_cast %156 : vector<1x1x32xf32> to vector<1x32xf32>
    %c0_66 = arith.constant 0 : index
    %c0_67 = arith.constant 0 : index
    %c0_68 = arith.constant 0 : index
    %158 = vector.load %arg15[%c0_66, %c0_67, %c0_68] : memref<1x1x32xf32, #tpu.memory_space<vmem>>, vector<1x1x32xf32>
    %159 = vector.shape_cast %158 : vector<1x1x32xf32> to vector<1x32xf32>
    %cst_69 = arith.constant dense<0.000000e+00> : vector<8xf32>
    %160 = vector.multi_reduction <add>, %155, %cst_69 [1] : vector<8x32xf32> to vector<8xf32>
    %161 = vector.shape_cast %160 : vector<8xf32> to vector<8x1xf32>
    %cst_70 = arith.constant 3.200000e+01 : f32
    %162 = vector.broadcast %cst_70 : f32 to vector<8x1xf32>
    %163 = arith.divf %161, %162 : vector<8x1xf32>
    %164 = vector.broadcast %163 : vector<8x1xf32> to vector<8x32xf32>
    %165 = arith.subf %155, %164 : vector<8x32xf32>
    %166 = arith.mulf %165, %165 : vector<8x32xf32>
    %cst_71 = arith.constant dense<0.000000e+00> : vector<8xf32>
    %167 = vector.multi_reduction <add>, %166, %cst_71 [1] : vector<8x32xf32> to vector<8xf32>
    %168 = vector.shape_cast %167 : vector<8xf32> to vector<8x1xf32>
    %cst_72 = arith.constant 3.200000e+01 : f32
    %169 = vector.broadcast %cst_72 : f32 to vector<8x1xf32>
    %170 = arith.divf %168, %169 : vector<8x1xf32>
    %171 = vector.broadcast %163 : vector<8x1xf32> to vector<8x32xf32>
    %172 = arith.subf %155, %171 : vector<8x32xf32>
    %cst_73 = arith.constant 9.99999974E-6 : f32
    %173 = vector.broadcast %cst_73 : f32 to vector<8x1xf32>
    %174 = arith.addf %170, %173 : vector<8x1xf32>
    %175 = math.rsqrt %174 : vector<8x1xf32>
    %176 = vector.broadcast %175 : vector<8x1xf32> to vector<8x32xf32>
    %177 = arith.mulf %172, %176 : vector<8x32xf32>
    %178 = vector.broadcast %157 : vector<1x32xf32> to vector<8x32xf32>
    %179 = arith.mulf %177, %178 : vector<8x32xf32>
    %180 = vector.broadcast %159 : vector<1x32xf32> to vector<8x32xf32>
    %181 = arith.addf %179, %180 : vector<8x32xf32>
    %c0_74 = arith.constant 0 : index
    %c0_75 = arith.constant 0 : index
    %182 = vector.load %arg19[%c0_74, %c0_75] : memref<8x32xf32, #tpu.memory_space<vmem>>, vector<8x32xf32>
    tpu.vector_store %arg19[%c0_74, %c0_75], %181 {strides = array<i32>} : memref<8x32xf32, #tpu.memory_space<vmem>>, vector<8x32xf32>,
    %c1_i32 = arith.constant 1 : i32
    %183 = arith.cmpi eq, %arg1, %c1_i32 : i32
    %184 = arith.extui %183 : i1 to i32
    %c0_i32_76 = arith.constant 0 : i32
    %185 = arith.cmpi ne, %184, %c0_i32_76 : i32
    scf.if %185 {
      %186 = arith.truncf %181 : vector<8x32xf32> to vector<8x32xbf16>
      %c0_77 = arith.constant 0 : index
      %c0_78 = arith.constant 0 : index
      %187 = vector.load %arg16[%c0_77, %c0_78] : memref<32x128xbf16, #tpu.memory_space<vmem>>, vector<32x128xbf16>
      %cst_79 = arith.constant dense<0.000000e+00> : vector<8x128xf32>
      %188 = tpu.matmul %186, %187, %cst_79 {dimension_numbers = #tpu.dot_dimension_numbers<[1], [0], [0], [1], [0, 0, 1, 1], [], []>} : vector<8x32xbf16>, vector<32x128xbf16>, vector<8x128xf32> -> vector<8x128xf32>
      %c0_80 = arith.constant 0 : index
      %c0_81 = arith.constant 0 : index
      %189 = vector.load %arg17[%c0_80, %c0_81] : memref<1x128xf32, #tpu.memory_space<vmem>>, vector<1x128xf32>
      %190 = vector.broadcast %189 : vector<1x128xf32> to vector<8x128xf32>
      %191 = arith.addf %188, %190 : vector<8x128xf32>
      %c0_82 = arith.constant 0 : index
      %c0_83 = arith.constant 0 : index
      %192 = vector.load %arg18[%c0_82, %c0_83] : memref<8x128xf32, #tpu.memory_space<vmem>>, vector<8x128xf32>
      tpu.vector_store %arg18[%c0_82, %c0_83], %191 {strides = array<i32>} : memref<8x128xf32, #tpu.memory_space<vmem>>, vector<8x128xf32>,
    } else {
    }
    return
  }
  func.func @transform_0(%arg0: i32, %arg1: i32) -> (i32, i32) {
    %c0_i32 = arith.constant 0 : i32
    %c0_i32_0 = arith.constant 0 : i32
    return %arg0, %c0_i32 : i32, i32
  }
  func.func @transform_1(%arg0: i32, %arg1: i32) -> (i32, i32) {
    %c0_i32 = arith.constant 0 : i32
    %c0_i32_0 = arith.constant 0 : i32
    %c0_i32_1 = arith.constant 0 : i32
    return %c0_i32, %c0_i32_0 : i32, i32
  }
  func.func @transform_2(%arg0: i32, %arg1: i32) -> (i32, i32, i32) {
    %c0_i32 = arith.constant 0 : i32
    %c0_i32_0 = arith.constant 0 : i32
    %c0_i32_1 = arith.constant 0 : i32
    return %arg1, %c0_i32, %c0_i32_0 : i32, i32, i32
  }
  func.func @transform_3(%arg0: i32, %arg1: i32) -> (i32, i32, i32) {
    %c0_i32 = arith.constant 0 : i32
    %c0_i32_0 = arith.constant 0 : i32
    %c0_i32_1 = arith.constant 0 : i32
    return %arg1, %c0_i32, %c0_i32_0 : i32, i32, i32
  }
  func.func @transform_4(%arg0: i32, %arg1: i32) -> (i32, i32, i32) {
    %c0_i32 = arith.constant 0 : i32
    %c0_i32_0 = arith.constant 0 : i32
    %c0_i32_1 = arith.constant 0 : i32
    return %arg1, %c0_i32, %c0_i32_0 : i32, i32, i32
  }
  func.func @transform_5(%arg0: i32, %arg1: i32) -> (i32, i32, i32) {
    %c0_i32 = arith.constant 0 : i32
    %c0_i32_0 = arith.constant 0 : i32
    %c0_i32_1 = arith.constant 0 : i32
    return %arg1, %c0_i32, %c0_i32_0 : i32, i32, i32
  }
  func.func @transform_6(%arg0: i32, %arg1: i32) -> (i32, i32, i32) {
    %c0_i32 = arith.constant 0 : i32
    %c0_i32_0 = arith.constant 0 : i32
    %c0_i32_1 = arith.constant 0 : i32
    return %arg1, %c0_i32, %c0_i32_0 : i32, i32, i32
  }
  func.func @transform_7(%arg0: i32, %arg1: i32) -> (i32, i32, i32) {
    %c0_i32 = arith.constant 0 : i32
    %c0_i32_0 = arith.constant 0 : i32
    %c0_i32_1 = arith.constant 0 : i32
    return %arg1, %c0_i32, %c0_i32_0 : i32, i32, i32
  }
  func.func @transform_8(%arg0: i32, %arg1: i32) -> (i32, i32, i32) {
    %c0_i32 = arith.constant 0 : i32
    %c0_i32_0 = arith.constant 0 : i32
    %c0_i32_1 = arith.constant 0 : i32
    return %arg1, %c0_i32, %c0_i32_0 : i32, i32, i32
  }
  func.func @transform_9(%arg0: i32, %arg1: i32) -> (i32, i32, i32) {
    %c0_i32 = arith.constant 0 : i32
    %c0_i32_0 = arith.constant 0 : i32
    %c0_i32_1 = arith.constant 0 : i32
    return %arg1, %c0_i32, %c0_i32_0 : i32, i32, i32
  }
  func.func @transform_10(%arg0: i32, %arg1: i32) -> (i32, i32, i32) {
    %c0_i32 = arith.constant 0 : i32
    %c0_i32_0 = arith.constant 0 : i32
    %c0_i32_1 = arith.constant 0 : i32
    return %arg1, %c0_i32, %c0_i32_0 : i32, i32, i32
  }
  func.func @transform_11(%arg0: i32, %arg1: i32) -> (i32, i32, i32) {
    %c0_i32 = arith.constant 0 : i32
    %c0_i32_0 = arith.constant 0 : i32
    %c0_i32_1 = arith.constant 0 : i32
    return %arg1, %c0_i32, %c0_i32_0 : i32, i32, i32
  }
  func.func @transform_12(%arg0: i32, %arg1: i32) -> (i32, i32, i32) {
    %c0_i32 = arith.constant 0 : i32
    %c0_i32_0 = arith.constant 0 : i32
    %c0_i32_1 = arith.constant 0 : i32
    return %arg1, %c0_i32, %c0_i32_0 : i32, i32, i32
  }
  func.func @transform_13(%arg0: i32, %arg1: i32) -> (i32, i32, i32) {
    %c0_i32 = arith.constant 0 : i32
    %c0_i32_0 = arith.constant 0 : i32
    %c0_i32_1 = arith.constant 0 : i32
    return %arg1, %c0_i32, %c0_i32_0 : i32, i32, i32
  }
  func.func @transform_14(%arg0: i32, %arg1: i32) -> (i32, i32) {
    %c0_i32 = arith.constant 0 : i32
    %c0_i32_0 = arith.constant 0 : i32
    %c0_i32_1 = arith.constant 0 : i32
    return %c0_i32, %c0_i32_0 : i32, i32
  }
  func.func @transform_15(%arg0: i32, %arg1: i32) -> (i32, i32) {
    %c0_i32 = arith.constant 0 : i32
    %c0_i32_0 = arith.constant 0 : i32
    %c0_i32_1 = arith.constant 0 : i32
    return %c0_i32, %c0_i32_0 : i32, i32
  }
  func.func @transform_16(%arg0: i32, %arg1: i32) -> (i32, i32) {
    %c0_i32 = arith.constant 0 : i32
    %c0_i32_0 = arith.constant 0 : i32
    return %arg0, %c0_i32 : i32, i32
  }
}

</mosaic_0001>

<llo_original>
// kernel: transformer_forward.1
$region0: #{transformer_forward.1}
  #allocation0 [shape = 'u32[]', space=smem, size = 0x4, offset = 0x4, fixed_abs, tag = 'smem constant byte address 0x4 - core index']
  #allocation1 [shape = 'u32[144,128]{1,0:T(1,128)}', space=vmem, size = 0x12000, scoped, tag = 'internal scratch']
  #allocation2 [shape = 'f32[8,32]{1,0:T(8,128)}', space=vmem, size = 0x1000, scoped, tag = 'scratch operand']
  %s0 = inlined_call_operand.vmem [shape: f32[16,32], index: 0, kind: input, shape index: {}]
  %s1 = inlined_call_operand.vmem [shape: f32[8,8], index: 1, kind: input, shape index: {}]
  %s2 = inlined_call_operand.vmem [shape: bf16[2,32,96], index: 2, kind: input, shape index: {}]
  %s3 = inlined_call_operand.vmem [shape: f32[2,1,96], index: 3, kind: input, shape index: {}]
  %s4 = inlined_call_operand.vmem [shape: bf16[2,32,32], index: 4, kind: input, shape index: {}]
  %s5 = inlined_call_operand.vmem [shape: f32[2,1,32], index: 5, kind: input, shape index: {}]
  %s6 = inlined_call_operand.vmem [shape: bf16[2,32,64], index: 6, kind: input, shape index: {}]
  %s7 = inlined_call_operand.vmem [shape: f32[2,1,64], index: 7, kind: input, shape index: {}]
  %s8 = inlined_call_operand.vmem [shape: bf16[2,64,32], index: 8, kind: input, shape index: {}]
  %s9 = inlined_call_operand.vmem [shape: f32[2,1,32], index: 9, kind: input, shape index: {}]
  %s10 = inlined_call_operand.vmem [shape: f32[2,1,32], index: 10, kind: input, shape index: {}]
  %s11 = inlined_call_operand.vmem [shape: f32[2,1,32], index: 11, kind: input, shape index: {}]
  %s12 = inlined_call_operand.vmem [shape: f32[2,1,32], index: 12, kind: input, shape index: {}]
  %s13 = inlined_call_operand.vmem [shape: f32[2,1,32], index: 13, kind: input, shape index: {}]
  %s14 = inlined_call_operand.vmem [shape: bf16[32,128], index: 14, kind: input, shape index: {}]
  %s15 = inlined_call_operand.vmem [shape: f32[1,128], index: 15, kind: input, shape index: {}]
  %s16 = inlined_call_operand.vmem [shape: f32[16,128], index: 16, kind: output, shape index: {}]
  %s17 = sld [smem:[#allocation0]]
  $region105: #{transformer_forward.1} parent=0
    _
  %s19 = ssub.s32 1, %s17
  %s20 = scalar_select 0, %s19, %s17
  loop: start=0, step=1, limit=6
  $region2: #{transformer_forward.1} parent=0 // loop_pre_header
    _
  $region3: #{transformer_forward.1} parent=0 // loop_header
    %s22 = sphi 0, %s26
    %p23 = scmp.ge.s32.totalorder %s22, 6
    %s29 = sphi 0, %s41
    %s30 = sphi 0, %s37
    %s31 = sphi 0, %s29
    %s32 = sphi 0, %s30
    %s33 = sphi 0, %s31
    %s34 = sphi 0, %s32
    %s44 = sphi 0, %s46
    %s47 = sphi 0, %s44
    %s48 = sphi 0, %s47
    %s64 = sphi 0, %s48
    %s68 = sphi 0, %s68
    %s70 = sphi 0, %s68
    %s71 = sphi 0, %s70
    %s85 = sphi 0, %s71
    %s91 = sphi 0, %s93
    %s94 = sphi 0, %s91
    %s95 = sphi 0, %s94
    %s111 = sphi 0, %s95
    %s117 = sphi 0, %s119
    %s120 = sphi 0, %s117
    %s121 = sphi 0, %s120
    %s137 = sphi 0, %s121
    %s143 = sphi 0, %s145
    %s146 = sphi 0, %s143
    %s147 = sphi 0, %s146
    %s163 = sphi 0, %s147
    %s169 = sphi 0, %s171
    %s172 = sphi 0, %s169
    %s173 = sphi 0, %s172
    %s189 = sphi 0, %s173
    %s195 = sphi 0, %s197
    %s198 = sphi 0, %s195
    %s199 = sphi 0, %s198
    %s215 = sphi 0, %s199
    %s221 = sphi 0, %s223
    %s224 = sphi 0, %s221
    %s225 = sphi 0, %s224
    %s241 = sphi 0, %s225
    %s247 = sphi 0, %s249
    %s250 = sphi 0, %s247
    %s251 = sphi 0, %s250
    %s267 = sphi 0, %s251
    %s273 = sphi 0, %s275
    %s276 = sphi 0, %s273
    %s277 = sphi 0, %s276
    %s293 = sphi 0, %s277
    %s299 = sphi 0, %s301
    %s302 = sphi 0, %s299
    %s303 = sphi 0, %s302
    %s319 = sphi 0, %s303
    %s325 = sphi 0, %s327
    %s328 = sphi 0, %s325
    %s329 = sphi 0, %s328
    %s345 = sphi 0, %s329
    %s351 = sphi 0, %s353
    %s354 = sphi 0, %s351
    %s355 = sphi 0, %s354
    %s371 = sphi 0, %s355
    %s377 = sphi 0, %s379
    %s380 = sphi 0, %s377
    %s381 = sphi 0, %s380
    %s397 = sphi 0, %s381
    %s401 = sphi 0, %s401
    %s403 = sphi 0, %s401
    %s404 = sphi 0, %s403
    %s418 = sphi 0, %s404
    %s422 = sphi 0, %s422
    %s424 = sphi 0, %s422
    %s425 = sphi 0, %s424
    %s439 = sphi 0, %s425
    %s445 = sphi 0, %s447
    %s448 = sphi 0, %s445
    %s449 = sphi 0, %s448
    %s465 = sphi 0, %s449
  $region4: #{transformer_forward.1} parent=0 // loop_header_branch
    %25 = sbr.rel (%p23) target = $region8
  $region5: #{transformer_forward.1} parent=0 // loop_body
    %s27 = ssub.s32 %s22, 1
    %s28 = ssub.s32 %s22, 2
    %s35 = sadd.s32 1, %s30
    %p36 = scmp.ge.s32.totalorder %s35, 2
    %s37 = scalar_select %p36, 0, %s35
    %s38 = sadd.s32 1, %s29
    %s39 = scalar_select %p36, %s38, %s29
    %p40 = scmp.ge.s32.totalorder %s39, 2
    %s41 = scalar_select %p40, 0, %s39
    %s42 = ssub.s32 %s29, %s41
    %p43 = scmp.eq.s32.totalorder %s42, 0
    %s45 = sadd.s32 %s44, 1
    %s46 = scalar_select %p43, %s44, %s45
    %p49 = pneg %p43
    %p50 = scmp.eq.s32.totalorder %s22, 3
    %p51 = por %p49, %p50
    %p52 = scmp.ne.s32.totalorder %s44, %s47
    %p53 = scmp.eq.s32.totalorder %s22, 0
    %p54 = por %p52, %p53
    %p55 = scmp.ne.s32.totalorder %s44, %s47
    %p56 = scmp.eq.s32.totalorder %s27, 3
    %p57 = por %p55, %p56
    %p58 = scmp.ne.s32.totalorder %s47, %s48
    %p59 = scmp.eq.s32.totalorder %s27, 0
    %p60 = por %p58, %p59
    %p61 = scmp.ne.s32.totalorder %s47, %s48
    %p62 = scmp.eq.s32.totalorder %s28, 3
    %p63 = por %p61, %p62
    %p65 = scmp.ne.s32.totalorder %s48, %s64
    %p66 = scmp.eq.s32.totalorder %s28, 0
    %p67 = por %p65, %p66
    %s69 = sadd.s32 %s68, 1
    %p72 = scmp.eq.s32.totalorder %s22, 3
    %p73 = scmp.ne.s32.totalorder %s68, %s70
    %p74 = scmp.eq.s32.totalorder %s22, 0
    %p75 = por %p73, %p74
    %p76 = scmp.ne.s32.totalorder %s68, %s70
    %p77 = scmp.eq.s32.totalorder %s27, 3
    %p78 = por %p76, %p77
    %p79 = scmp.ne.s32.totalorder %s70, %s71
    %p80 = scmp.eq.s32.totalorder %s27, 0
    %p81 = por %p79, %p80
    %p82 = scmp.ne.s32.totalorder %s70, %s71
    %p83 = scmp.eq.s32.totalorder %s28, 3
    %p84 = por %p82, %p83
    %p86 = scmp.ne.s32.totalorder %s71, %s85
    %p87 = scmp.eq.s32.totalorder %s28, 0
    %p88 = por %p86, %p87
    %s89 = ssub.s32 %s30, %s37
    %p90 = scmp.eq.s32.totalorder %s89, 0
    %s92 = sadd.s32 %s91, 1
    %s93 = scalar_select %p90, %s91, %s92
    %p96 = pneg %p90
    %p97 = scmp.eq.s32.totalorder %s22, 3
    %p98 = por %p96, %p97
    %p99 = scmp.ne.s32.totalorder %s91, %s94
    %p100 = scmp.eq.s32.totalorder %s22, 0
    %p101 = por %p99, %p100
    %p102 = scmp.ne.s32.totalorder %s91, %s94
    %p103 = scmp.eq.s32.totalorder %s27, 3
    %p104 = por %p102, %p103
    %p105 = scmp.ne.s32.totalorder %s94, %s95
    %p106 = scmp.eq.s32.totalorder %s27, 0
    %p107 = por %p105, %p106
    %p108 = scmp.ne.s32.totalorder %s94, %s95
    %p109 = scmp.eq.s32.totalorder %s28, 3
    %p110 = por %p108, %p109
    %p112 = scmp.ne.s32.totalorder %s95, %s111
    %p113 = scmp.eq.s32.totalorder %s28, 0
    %p114 = por %p112, %p113
    %s115 = ssub.s32 %s30, %s37
    %p116 = scmp.eq.s32.totalorder %s115, 0
    %s118 = sadd.s32 %s117, 1
    %s119 = scalar_select %p116, %s117, %s118
    %p122 = pneg %p116
    %p123 = scmp.eq.s32.totalorder %s22, 3
    %p124 = por %p122, %p123
    %p125 = scmp.ne.s32.totalorder %s117, %s120
    %p126 = scmp.eq.s32.totalorder %s22, 0
    %p127 = por %p125, %p126
    %p128 = scmp.ne.s32.totalorder %s117, %s120
    %p129 = scmp.eq.s32.totalorder %s27, 3
    %p130 = por %p128, %p129
    %p131 = scmp.ne.s32.totalorder %s120, %s121
    %p132 = scmp.eq.s32.totalorder %s27, 0
    %p133 = por %p131, %p132
    %p134 = scmp.ne.s32.totalorder %s120, %s121
    %p135 = scmp.eq.s32.totalorder %s28, 3
    %p136 = por %p134, %p135
    %p138 = scmp.ne.s32.totalorder %s121, %s137
    %p139 = scmp.eq.s32.totalorder %s28, 0
    %p140 = por %p138, %p139
    %s141 = ssub.s32 %s30, %s37
    %p142 = scmp.eq.s32.totalorder %s141, 0
    %s144 = sadd.s32 %s143, 1
    %s145 = scalar_select %p142, %s143, %s144
    %p148 = pneg %p142
    %p149 = scmp.eq.s32.totalorder %s22, 3
    %p150 = por %p148, %p149
    %p151 = scmp.ne.s32.totalorder %s143, %s146
    %p152 = scmp.eq.s32.totalorder %s22, 0
    %p153 = por %p151, %p152
    %p154 = scmp.ne.s32.totalorder %s143, %s146
    %p155 = scmp.eq.s32.totalorder %s27, 3
    %p156 = por %p154, %p155
    %p157 = scmp.ne.s32.totalorder %s146, %s147
    %p158 = scmp.eq.s32.totalorder %s27, 0
    %p159 = por %p157, %p158
    %p160 = scmp.ne.s32.totalorder %s146, %s147
    %p161 = scmp.eq.s32.totalorder %s28, 3
    %p162 = por %p160, %p161
    %p164 = scmp.ne.s32.totalorder %s147, %s163
    %p165 = scmp.eq.s32.totalorder %s28, 0
    %p166 = por %p164, %p165
    %s167 = ssub.s32 %s30, %s37
    %p168 = scmp.eq.s32.totalorder %s167, 0
    %s170 = sadd.s32 %s169, 1
    %s171 = scalar_select %p168, %s169, %s170
    %p174 = pneg %p168
    %p175 = scmp.eq.s32.totalorder %s22, 3
    %p176 = por %p174, %p175
    %p177 = scmp.ne.s32.totalorder %s169, %s172
    %p178 = scmp.eq.s32.totalorder %s22, 0
    %p179 = por %p177, %p178
    %p180 = scmp.ne.s32.totalorder %s169, %s172
    %p181 = scmp.eq.s32.totalorder %s27, 3
    %p182 = por %p180, %p181
    %p183 = scmp.ne.s32.totalorder %s172, %s173
    %p184 = scmp.eq.s32.totalorder %s27, 0
    %p185 = por %p183, %p184
    %p186 = scmp.ne.s32.totalorder %s172, %s173
    %p187 = scmp.eq.s32.totalorder %s28, 3
    %p188 = por %p186, %p187
    %p190 = scmp.ne.s32.totalorder %s173, %s189
    %p191 = scmp.eq.s32.totalorder %s28, 0
    %p192 = por %p190, %p191
    %s193 = ssub.s32 %s30, %s37
    %p194 = scmp.eq.s32.totalorder %s193, 0
    %s196 = sadd.s32 %s195, 1
    %s197 = scalar_select %p194, %s195, %s196
    %p200 = pneg %p194
    %p201 = scmp.eq.s32.totalorder %s22, 3
    %p202 = por %p200, %p201
    %p203 = scmp.ne.s32.totalorder %s195, %s198
    %p204 = scmp.eq.s32.totalorder %s22, 0
    %p205 = por %p203, %p204
    %p206 = scmp.ne.s32.totalorder %s195, %s198
    %p207 = scmp.eq.s32.totalorder %s27, 3
    %p208 = por %p206, %p207
    %p209 = scmp.ne.s32.totalorder %s198, %s199
    %p210 = scmp.eq.s32.totalorder %s27, 0
    %p211 = por %p209, %p210
    %p212 = scmp.ne.s32.totalorder %s198, %s199
    %p213 = scmp.eq.s32.totalorder %s28, 3
    %p214 = por %p212, %p213
    %p216 = scmp.ne.s32.totalorder %s199, %s215
    %p217 = scmp.eq.s32.totalorder %s28, 0
    %p218 = por %p216, %p217
    %s219 = ssub.s32 %s30, %s37
    %p220 = scmp.eq.s32.totalorder %s219, 0
    %s222 = sadd.s32 %s221, 1
    %s223 = scalar_select %p220, %s221, %s222
    %p226 = pneg %p220
    %p227 = scmp.eq.s32.totalorder %s22, 3
    %p228 = por %p226, %p227
    %p229 = scmp.ne.s32.totalorder %s221, %s224
    %p230 = scmp.eq.s32.totalorder %s22, 0
    %p231 = por %p229, %p230
    %p232 = scmp.ne.s32.totalorder %s221, %s224
    %p233 = scmp.eq.s32.totalorder %s27, 3
    %p234 = por %p232, %p233
    %p235 = scmp.ne.s32.totalorder %s224, %s225
    %p236 = scmp.eq.s32.totalorder %s27, 0
    %p237 = por %p235, %p236
    %p238 = scmp.ne.s32.totalorder %s224, %s225
    %p239 = scmp.eq.s32.totalorder %s28, 3
    %p240 = por %p238, %p239
    %p242 = scmp.ne.s32.totalorder %s225, %s241
    %p243 = scmp.eq.s32.totalorder %s28, 0
    %p244 = por %p242, %p243
    %s245 = ssub.s32 %s30, %s37
    %p246 = scmp.eq.s32.totalorder %s245, 0
    %s248 = sadd.s32 %s247, 1
    %s249 = scalar_select %p246, %s247, %s248
    %p252 = pneg %p246
    %p253 = scmp.eq.s32.totalorder %s22, 3
    %p254 = por %p252, %p253
    %p255 = scmp.ne.s32.totalorder %s247, %s250
    %p256 = scmp.eq.s32.totalorder %s22, 0
    %p257 = por %p255, %p256
    %p258 = scmp.ne.s32.totalorder %s247, %s250
    %p259 = scmp.eq.s32.totalorder %s27, 3
    %p260 = por %p258, %p259
    %p261 = scmp.ne.s32.totalorder %s250, %s251
    %p262 = scmp.eq.s32.totalorder %s27, 0
    %p263 = por %p261, %p262
    %p264 = scmp.ne.s32.totalorder %s250, %s251
    %p265 = scmp.eq.s32.totalorder %s28, 3
    %p266 = por %p264, %p265
    %p268 = scmp.ne.s32.totalorder %s251, %s267
    %p269 = scmp.eq.s32.totalorder %s28, 0
    %p270 = por %p268, %p269
    %s271 = ssub.s32 %s30, %s37
    %p272 = scmp.eq.s32.totalorder %s271, 0
    %s274 = sadd.s32 %s273, 1
    %s275 = scalar_select %p272, %s273, %s274
    %p278 = pneg %p272
    %p279 = scmp.eq.s32.totalorder %s22, 3
    %p280 = por %p278, %p279
    %p281 = scmp.ne.s32.totalorder %s273, %s276
    %p282 = scmp.eq.s32.totalorder %s22, 0
    %p283 = por %p281, %p282
    %p284 = scmp.ne.s32.totalorder %s273, %s276
    %p285 = scmp.eq.s32.totalorder %s27, 3
    %p286 = por %p284, %p285
    %p287 = scmp.ne.s32.totalorder %s276, %s277
    %p288 = scmp.eq.s32.totalorder %s27, 0
    %p289 = por %p287, %p288
    %p290 = scmp.ne.s32.totalorder %s276, %s277
    %p291 = scmp.eq.s32.totalorder %s28, 3
    %p292 = por %p290, %p291
    %p294 = scmp.ne.s32.totalorder %s277, %s293
    %p295 = scmp.eq.s32.totalorder %s28, 0
    %p296 = por %p294, %p295
    %s297 = ssub.s32 %s30, %s37
    %p298 = scmp.eq.s32.totalorder %s297, 0
    %s300 = sadd.s32 %s299, 1
    %s301 = scalar_select %p298, %s299, %s300
    %p304 = pneg %p298
    %p305 = scmp.eq.s32.totalorder %s22, 3
    %p306 = por %p304, %p305
    %p307 = scmp.ne.s32.totalorder %s299, %s302
    %p308 = scmp.eq.s32.totalorder %s22, 0
    %p309 = por %p307, %p308
    %p310 = scmp.ne.s32.totalorder %s299, %s302
    %p311 = scmp.eq.s32.totalorder %s27, 3
    %p312 = por %p310, %p311
    %p313 = scmp.ne.s32.totalorder %s302, %s303
    %p314 = scmp.eq.s32.totalorder %s27, 0
    %p315 = por %p313, %p314
    %p316 = scmp.ne.s32.totalorder %s302, %s303
    %p317 = scmp.eq.s32.totalorder %s28, 3
    %p318 = por %p316, %p317
    %p320 = scmp.ne.s32.totalorder %s303, %s319
    %p321 = scmp.eq.s32.totalorder %s28, 0
    %p322 = por %p320, %p321
    %s323 = ssub.s32 %s30, %s37
    %p324 = scmp.eq.s32.totalorder %s323, 0
    %s326 = sadd.s32 %s325, 1
    %s327 = scalar_select %p324, %s325, %s326
    %p330 = pneg %p324
    %p331 = scmp.eq.s32.totalorder %s22, 3
    %p332 = por %p330, %p331
    %p333 = scmp.ne.s32.totalorder %s325, %s328
    %p334 = scmp.eq.s32.totalorder %s22, 0
    %p335 = por %p333, %p334
    %p336 = scmp.ne.s32.totalorder %s325, %s328
    %p337 = scmp.eq.s32.totalorder %s27, 3
    %p338 = por %p336, %p337
    %p339 = scmp.ne.s32.totalorder %s328, %s329
    %p340 = scmp.eq.s32.totalorder %s27, 0
    %p341 = por %p339, %p340
    %p342 = scmp.ne.s32.totalorder %s328, %s329
    %p343 = scmp.eq.s32.totalorder %s28, 3
    %p344 = por %p342, %p343
    %p346 = scmp.ne.s32.totalorder %s329, %s345
    %p347 = scmp.eq.s32.totalorder %s28, 0
    %p348 = por %p346, %p347
    %s349 = ssub.s32 %s30, %s37
    %p350 = scmp.eq.s32.totalorder %s349, 0
    %s352 = sadd.s32 %s351, 1
    %s353 = scalar_select %p350, %s351, %s352
    %p356 = pneg %p350
    %p357 = scmp.eq.s32.totalorder %s22, 3
    %p358 = por %p356, %p357
    %p359 = scmp.ne.s32.totalorder %s351, %s354
    %p360 = scmp.eq.s32.totalorder %s22, 0
    %p361 = por %p359, %p360
    %p362 = scmp.ne.s32.totalorder %s351, %s354
    %p363 = scmp.eq.s32.totalorder %s27, 3
    %p364 = por %p362, %p363
    %p365 = scmp.ne.s32.totalorder %s354, %s355
    %p366 = scmp.eq.s32.totalorder %s27, 0
    %p367 = por %p365, %p366
    %p368 = scmp.ne.s32.totalorder %s354, %s355
    %p369 = scmp.eq.s32.totalorder %s28, 3
    %p370 = por %p368, %p369
    %p372 = scmp.ne.s32.totalorder %s355, %s371
    %p373 = scmp.eq.s32.totalorder %s28, 0
    %p374 = por %p372, %p373
    %s375 = ssub.s32 %s30, %s37
    %p376 = scmp.eq.s32.totalorder %s375, 0
    %s378 = sadd.s32 %s377, 1
    %s379 = scalar_select %p376, %s377, %s378
    %p382 = pneg %p376
    %p383 = scmp.eq.s32.totalorder %s22, 3
    %p384 = por %p382, %p383
    %p385 = scmp.ne.s32.totalorder %s377, %s380
    %p386 = scmp.eq.s32.totalorder %s22, 0
    %p387 = por %p385, %p386
    %p388 = scmp.ne.s32.totalorder %s377, %s380
    %p389 = scmp.eq.s32.totalorder %s27, 3
    %p390 = por %p388, %p389
    %p391 = scmp.ne.s32.totalorder %s380, %s381
    %p392 = scmp.eq.s32.totalorder %s27, 0
    %p393 = por %p391, %p392
    %p394 = scmp.ne.s32.totalorder %s380, %s381
    %p395 = scmp.eq.s32.totalorder %s28, 3
    %p396 = por %p394, %p395
    %p398 = scmp.ne.s32.totalorder %s381, %s397
    %p399 = scmp.eq.s32.totalorder %s28, 0
    %p400 = por %p398, %p399
    %s402 = sadd.s32 %s401, 1
    %p405 = scmp.eq.s32.totalorder %s22, 3
    %p406 = scmp.ne.s32.totalorder %s401, %s403
    %p407 = scmp.eq.s32.totalorder %s22, 0
    %p408 = por %p406, %p407
    %p409 = scmp.ne.s32.totalorder %s401, %s403
    %p410 = scmp.eq.s32.totalorder %s27, 3
    %p411 = por %p409, %p410
    %p412 = scmp.ne.s32.totalorder %s403, %s404
    %p413 = scmp.eq.s32.totalorder %s27, 0
    %p414 = por %p412, %p413
    %p415 = scmp.ne.s32.totalorder %s403, %s404
    %p416 = scmp.eq.s32.totalorder %s28, 3
    %p417 = por %p415, %p416
    %p419 = scmp.ne.s32.totalorder %s404, %s418
    %p420 = scmp.eq.s32.totalorder %s28, 0
    %p421 = por %p419, %p420
    %s423 = sadd.s32 %s422, 1
    %p426 = scmp.eq.s32.totalorder %s22, 3
    %p427 = scmp.ne.s32.totalorder %s422, %s424
    %p428 = scmp.eq.s32.totalorder %s22, 0
    %p429 = por %p427, %p428
    %p430 = scmp.ne.s32.totalorder %s422, %s424
    %p431 = scmp.eq.s32.totalorder %s27, 3
    %p432 = por %p430, %p431
    %p433 = scmp.ne.s32.totalorder %s424, %s425
    %p434 = scmp.eq.s32.totalorder %s27, 0
    %p435 = por %p433, %p434
    %p436 = scmp.ne.s32.totalorder %s424, %s425
    %p437 = scmp.eq.s32.totalorder %s28, 3
    %p438 = por %p436, %p437
    %p440 = scmp.ne.s32.totalorder %s425, %s439
    %p441 = scmp.eq.s32.totalorder %s28, 0
    %p442 = por %p440, %p441
    %s443 = ssub.s32 %s29, %s41
    %p444 = scmp.eq.s32.totalorder %s443, 0
    %s446 = sadd.s32 %s445, 1
    %s447 = scalar_select %p444, %s445, %s446
    %p450 = pneg %p444
    %p451 = scmp.eq.s32.totalorder %s22, 3
    %p452 = por %p450, %p451
    %p453 = scmp.ne.s32.totalorder %s445, %s448
    %p454 = scmp.eq.s32.totalorder %s22, 0
    %p455 = por %p453, %p454
    %p456 = scmp.ne.s32.totalorder %s445, %s448
    %p457 = scmp.eq.s32.totalorder %s27, 3
    %p458 = por %p456, %p457
    %p459 = scmp.ne.s32.totalorder %s448, %s449
    %p460 = scmp.eq.s32.totalorder %s27, 0
    %p461 = por %p459, %p460
    %p462 = scmp.ne.s32.totalorder %s448, %s449
    %p463 = scmp.eq.s32.totalorder %s28, 3
    %p464 = por %p462, %p463
    %p466 = scmp.ne.s32.totalorder %s449, %s465
    %p467 = scmp.eq.s32.totalorder %s28, 0
    %p468 = por %p466, %p467
    %p469 = scmp.le.s32.totalorder 1, %s22
    %p470 = scmp.lt.s32.totalorder %s22, 5
    %p471 = pnand %p469, %p470
    %p472 = pneg %p471
    // Predicated region
    $region9: #{transformer_forward.1} parent=5 // pred_check
      _
    $region10: #{transformer_forward.1} parent=5 // pred_check_branch
      %474 = sbr.rel (%p471) target = $region12
    $region11: #{transformer_forward.1} parent=5 // pred_region
      %s475 = ssub.s32 %s22, 1
      // Predicated region
      $region13: #{transformer_forward.1} parent=11 // pred_check
        %p476 = pneg %p81
      $region14: #{transformer_forward.1} parent=11 // pred_check_branch
        %478 = sbr.rel (%p476) target = $region16
      $region15: #{transformer_forward.1} parent=11 // pred_region
        _
      $region16: #{transformer_forward.1} parent=11 // pred_fallthru
        _
      // Predicated region
      $region17: #{transformer_forward.1} parent=11 // pred_check
        %p479 = pneg %p414
      $region18: #{transformer_forward.1} parent=11 // pred_check_branch
        %481 = sbr.rel (%p479) target = $region20
      $region19: #{transformer_forward.1} parent=11 // pred_region
        _
      $region20: #{transformer_forward.1} parent=11 // pred_fallthru
        _
      // Predicated region
      $region21: #{transformer_forward.1} parent=11 // pred_check
        %p482 = pneg %p435
      $region22: #{transformer_forward.1} parent=11 // pred_check_branch
        %484 = sbr.rel (%p482) target = $region24
      $region23: #{transformer_forward.1} parent=11 // pred_region
        _
      $region24: #{transformer_forward.1} parent=11 // pred_fallthru
        _
    $region12: #{transformer_forward.1} parent=5 // pred_fallthru
      _
    %p485 = scmp.lt.s32.totalorder %s22, 4
    // Predicated region
    $region25: #{transformer_forward.1} parent=5 // pred_check
      %p486 = pneg %p485
    $region26: #{transformer_forward.1} parent=5 // pred_check_branch
      %488 = sbr.rel (%p486) target = $region28
    $region27: #{transformer_forward.1} parent=5 // pred_region
      // Predicated region
      $region29: #{transformer_forward.1} parent=27 // pred_check
        %p489 = pneg %p54
      $region30: #{transformer_forward.1} parent=27 // pred_check_branch
        %491 = sbr.rel (%p489) target = $region32
      $region31: #{transformer_forward.1} parent=27 // pred_region
        %p492 = scmp.lt.s32.totalorder %s29, 1
        %s493 = scalar_select %p492, %s29, 1
        %s494 = smul.addr %s493, 8
        %s495 = scalar_lea.vmem %s0, %s494
      $region32: #{transformer_forward.1} parent=27 // pred_fallthru
        _
      // Predicated region
      $region33: #{transformer_forward.1} parent=27 // pred_check
        %p496 = pneg %p101
      $region34: #{transformer_forward.1} parent=27 // pred_check_branch
        %498 = sbr.rel (%p496) target = $region36
      $region35: #{transformer_forward.1} parent=27 // pred_region
        %p499 = scmp.lt.s32.totalorder %s30, 1
        %s500 = scalar_select %p499, %s30, 1
        %s501 = smul.addr %s500, 4
        %s502 = smul.addr %s501, 4
        %s503 = scalar_lea.vmem %s2, %s502
      $region36: #{transformer_forward.1} parent=27 // pred_fallthru
        _
      // Predicated region
      $region37: #{transformer_forward.1} parent=27 // pred_check
        %p504 = pneg %p127
      $region38: #{transformer_forward.1} parent=27 // pred_check_branch
        %506 = sbr.rel (%p504) target = $region40
      $region39: #{transformer_forward.1} parent=27 // pred_region
        %p507 = scmp.lt.s32.totalorder %s30, 1
        %s508 = scalar_select %p507, %s30, 1
        %s509 = scalar_lea.vmem %s3, %s508
      $region40: #{transformer_forward.1} parent=27 // pred_fallthru
        _
      // Predicated region
      $region41: #{transformer_forward.1} parent=27 // pred_check
        %p510 = pneg %p153
      $region42: #{transformer_forward.1} parent=27 // pred_check_branch
        %512 = sbr.rel (%p510) target = $region44
      $region43: #{transformer_forward.1} parent=27 // pred_region
        %p513 = scmp.lt.s32.totalorder %s30, 1
        %s514 = scalar_select %p513, %s30, 1
        %s515 = smul.addr %s514, 4
        %s516 = smul.addr %s515, 4
        %s517 = scalar_lea.vmem %s4, %s516
      $region44: #{transformer_forward.1} parent=27 // pred_fallthru
        _
      // Predicated region
      $region45: #{transformer_forward.1} parent=27 // pred_check
        %p518 = pneg %p179
      $region46: #{transformer_forward.1} parent=27 // pred_check_branch
        %520 = sbr.rel (%p518) target = $region48
      $region47: #{transformer_forward.1} parent=27 // pred_region
        %p521 = scmp.lt.s32.totalorder %s30, 1
        %s522 = scalar_select %p521, %s30, 1
        %s523 = scalar_lea.vmem %s5, %s522
      $region48: #{transformer_forward.1} parent=27 // pred_fallthru
        _
      // Predicated region
      $region49: #{transformer_forward.1} parent=27 // pred_check
        %p524 = pneg %p205
      $region50: #{transformer_forward.1} parent=27 // pred_check_branch
        %526 = sbr.rel (%p524) target = $region52
      $region51: #{transformer_forward.1} parent=27 // pred_region
        %p527 = scmp.lt.s32.totalorder %s30, 1
        %s528 = scalar_select %p527, %s30, 1
        %s529 = smul.addr %s528, 4
        %s530 = smul.addr %s529, 4
        %s531 = scalar_lea.vmem %s6, %s530
      $region52: #{transformer_forward.1} parent=27 // pred_fallthru
        _
      // Predicated region
      $region53: #{transformer_forward.1} parent=27 // pred_check
        %p532 = pneg %p231
      $region54: #{transformer_forward.1} parent=27 // pred_check_branch
        %534 = sbr.rel (%p532) target = $region56
      $region55: #{transformer_forward.1} parent=27 // pred_region
        %p535 = scmp.lt.s32.totalorder %s30, 1
        %s536 = scalar_select %p535, %s30, 1
        %s537 = scalar_lea.vmem %s7, %s536
      $region56: #{transformer_forward.1} parent=27 // pred_fallthru
        _
      // Predicated region
      $region57: #{transformer_forward.1} parent=27 // pred_check
        %p538 = pneg %p257
      $region58: #{transformer_forward.1} parent=27 // pred_check_branch
        %540 = sbr.rel (%p538) target = $region60
      $region59: #{transformer_forward.1} parent=27 // pred_region
        %p541 = scmp.lt.s32.totalorder %s30, 1
        %s542 = scalar_select %p541, %s30, 1
        %s543 = smul.addr %s542, 8
        %s544 = smul.addr %s543, 4
        %s545 = scalar_lea.vmem %s8, %s544
      $region60: #{transformer_forward.1} parent=27 // pred_fallthru
        _
      // Predicated region
      $region61: #{transformer_forward.1} parent=27 // pred_check
        %p546 = pneg %p283
      $region62: #{transformer_forward.1} parent=27 // pred_check_branch
        %548 = sbr.rel (%p546) target = $region64
      $region63: #{transformer_forward.1} parent=27 // pred_region
        %p549 = scmp.lt.s32.totalorder %s30, 1
        %s550 = scalar_select %p549, %s30, 1
        %s551 = scalar_lea.vmem %s9, %s550
      $region64: #{transformer_forward.1} parent=27 // pred_fallthru
        _
      // Predicated region
      $region65: #{transformer_forward.1} parent=27 // pred_check
        %p552 = pneg %p309
      $region66: #{transformer_forward.1} parent=27 // pred_check_branch
        %554 = sbr.rel (%p552) target = $region68
      $region67: #{transformer_forward.1} parent=27 // pred_region
        %p555 = scmp.lt.s32.totalorder %s30, 1
        %s556 = scalar_select %p555, %s30, 1
        %s557 = scalar_lea.vmem %s10, %s556
      $region68: #{transformer_forward.1} parent=27 // pred_fallthru
        _
      // Predicated region
      $region69: #{transformer_forward.1} parent=27 // pred_check
        %p558 = pneg %p335
      $region70: #{transformer_forward.1} parent=27 // pred_check_branch
        %560 = sbr.rel (%p558) target = $region72
      $region71: #{transformer_forward.1} parent=27 // pred_region
        %p561 = scmp.lt.s32.totalorder %s30, 1
        %s562 = scalar_select %p561, %s30, 1
        %s563 = scalar_lea.vmem %s11, %s562
      $region72: #{transformer_forward.1} parent=27 // pred_fallthru
        _
      // Predicated region
      $region73: #{transformer_forward.1} parent=27 // pred_check
        %p564 = pneg %p361
      $region74: #{transformer_forward.1} parent=27 // pred_check_branch
        %566 = sbr.rel (%p564) target = $region76
      $region75: #{transformer_forward.1} parent=27 // pred_region
        %p567 = scmp.lt.s32.totalorder %s30, 1
        %s568 = scalar_select %p567, %s30, 1
        %s569 = scalar_lea.vmem %s12, %s568
      $region76: #{transformer_forward.1} parent=27 // pred_fallthru
        _
      // Predicated region
      $region77: #{transformer_forward.1} parent=27 // pred_check
        %p570 = pneg %p387
      $region78: #{transformer_forward.1} parent=27 // pred_check_branch
        %572 = sbr.rel (%p570) target = $region80
      $region79: #{transformer_forward.1} parent=27 // pred_region
        %p573 = scmp.lt.s32.totalorder %s30, 1
        %s574 = scalar_select %p573, %s30, 1
        %s575 = scalar_lea.vmem %s13, %s574
      $region80: #{transformer_forward.1} parent=27 // pred_fallthru
        _
    $region28: #{transformer_forward.1} parent=5 // pred_fallthru
      _
    %p576 = scmp.le.s32.totalorder 1, %s22
    %p577 = scmp.lt.s32.totalorder %s22, 5
    %p578 = pnand %p576, %p577
    %p579 = pneg %p578
    // Predicated region
    $region81: #{transformer_forward.1} parent=5 // pred_check
      _
    $region82: #{transformer_forward.1} parent=5 // pred_check_branch
      %581 = sbr.rel (%p578) target = $region84
    $region83: #{transformer_forward.1} parent=5 // pred_region
      %s582 = ssub.s32 %s22, 1
      %p583 = scmp.lt.s32.totalorder %s31, 1
      %s584 = scalar_select %p583, %s31, 1
      %s585 = smul.addr %s584, 8
      %s586 = scalar_lea.vmem %s0, %s585
      %p587 = pneg %p60
      %p588 = pneg %p57
      %p589 = pneg %p81
      %p590 = pneg %p78
      %p591 = scmp.lt.s32.totalorder %s32, 1
      %s592 = scalar_select %p591, %s32, 1
      %s593 = smul.addr %s592, 4
      %s594 = smul.addr %s593, 4
      %s595 = scalar_lea.vmem %s2, %s594
      %p596 = pneg %p107
      %p597 = pneg %p104
      %p598 = scmp.lt.s32.totalorder %s32, 1
      %s599 = scalar_select %p598, %s32, 1
      %s600 = scalar_lea.vmem %s3, %s599
      %p601 = pneg %p133
      %p602 = pneg %p130
      %p603 = scmp.lt.s32.totalorder %s32, 1
      %s604 = scalar_select %p603, %s32, 1
      %s605 = smul.addr %s604, 4
      %s606 = smul.addr %s605, 4
      %s607 = scalar_lea.vmem %s4, %s606
      %p608 = pneg %p159
      %p609 = pneg %p156
      %p610 = scmp.lt.s32.totalorder %s32, 1
      %s611 = scalar_select %p610, %s32, 1
      %s612 = scalar_lea.vmem %s5, %s611
      %p613 = pneg %p185
      %p614 = pneg %p182
      %p615 = scmp.lt.s32.totalorder %s32, 1
      %s616 = scalar_select %p615, %s32, 1
      %s617 = smul.addr %s616, 4
      %s618 = smul.addr %s617, 4
      %s619 = scalar_lea.vmem %s6, %s618
      %p620 = pneg %p211
      %p621 = pneg %p208
      %p622 = scmp.lt.s32.totalorder %s32, 1
      %s623 = scalar_select %p622, %s32, 1
      %s624 = scalar_lea.vmem %s7, %s623
      %p625 = pneg %p237
      %p626 = pneg %p234
      %p627 = scmp.lt.s32.totalorder %s32, 1
      %s628 = scalar_select %p627, %s32, 1
      %s629 = smul.addr %s628, 8
      %s630 = smul.addr %s629, 4
      %s631 = scalar_lea.vmem %s8, %s630
      %p632 = pneg %p263
      %p633 = pneg %p260
      %p634 = scmp.lt.s32.totalorder %s32, 1
      %s635 = scalar_select %p634, %s32, 1
      %s636 = scalar_lea.vmem %s9, %s635
      %p637 = pneg %p289
      %p638 = pneg %p286
      %p639 = scmp.lt.s32.totalorder %s32, 1
      %s640 = scalar_select %p639, %s32, 1
      %s641 = scalar_lea.vmem %s10, %s640
      %p642 = pneg %p315
      %p643 = pneg %p312
      %p644 = scmp.lt.s32.totalorder %s32, 1
      %s645 = scalar_select %p644, %s32, 1
      %s646 = scalar_lea.vmem %s11, %s645
      %p647 = pneg %p341
      %p648 = pneg %p338
      %p649 = scmp.lt.s32.totalorder %s32, 1
      %s650 = scalar_select %p649, %s32, 1
      %s651 = scalar_lea.vmem %s12, %s650
      %p652 = pneg %p367
      %p653 = pneg %p364
      %p654 = scmp.lt.s32.totalorder %s32, 1
      %s655 = scalar_select %p654, %s32, 1
      %s656 = scalar_lea.vmem %s13, %s655
      %p657 = pneg %p393
      %p658 = pneg %p390
      %p659 = pneg %p414
      %p660 = pneg %p411
      %p661 = pneg %p435
      %p662 = pneg %p432
      %p663 = pneg %p461
      %p664 = pneg %p458
      %p665 = scmp.lt.s32.totalorder %s31, 1
      %s666 = scalar_select %p665, %s31, 1
      %s667 = smul.addr %s666, 8
      %s668 = scalar_lea.vmem %s16, %s667
      %p669 = scmp.lt.s32.totalorder %s31, 1
      %s670 = scalar_select %p669, %s31, 1
      %s671 = smul.addr %s670, 8
      %s672 = scalar_lea.vmem %s0, %s671
      %p673 = scmp.lt.s32.totalorder %s32, 1
      %s674 = scalar_select %p673, %s32, 1
      %s675 = smul.addr %s674, 4
      %s676 = smul.addr %s675, 4
      %s677 = scalar_lea.vmem %s2, %s676
      %p678 = scmp.lt.s32.totalorder %s32, 1
      %s679 = scalar_select %p678, %s32, 1
      %s680 = scalar_lea.vmem %s3, %s679
      %p681 = scmp.lt.s32.totalorder %s32, 1
      %s682 = scalar_select %p681, %s32, 1
      %s683 = smul.addr %s682, 4
      %s684 = smul.addr %s683, 4
      %s685 = scalar_lea.vmem %s4, %s684
      %p686 = scmp.lt.s32.totalorder %s32, 1
      %s687 = scalar_select %p686, %s32, 1
      %s688 = scalar_lea.vmem %s5, %s687
      %p689 = scmp.lt.s32.totalorder %s32, 1
      %s690 = scalar_select %p689, %s32, 1
      %s691 = smul.addr %s690, 4
      %s692 = smul.addr %s691, 4
      %s693 = scalar_lea.vmem %s6, %s692
      %p694 = scmp.lt.s32.totalorder %s32, 1
      %s695 = scalar_select %p694, %s32, 1
      %s696 = scalar_lea.vmem %s7, %s695
      %p697 = scmp.lt.s32.totalorder %s32, 1
      %s698 = scalar_select %p697, %s32, 1
      %s699 = smul.addr %s698, 8
      %s700 = smul.addr %s699, 4
      %s701 = scalar_lea.vmem %s8, %s700
      %p702 = scmp.lt.s32.totalorder %s32, 1
      %s703 = scalar_select %p702, %s32, 1
      %s704 = scalar_lea.vmem %s9, %s703
      %p705 = scmp.lt.s32.totalorder %s32, 1
      %s706 = scalar_select %p705, %s32, 1
      %s707 = scalar_lea.vmem %s10, %s706
      %p708 = scmp.lt.s32.totalorder %s32, 1
      %s709 = scalar_select %p708, %s32, 1
      %s710 = scalar_lea.vmem %s11, %s709
      %p711 = scmp.lt.s32.totalorder %s32, 1
      %s712 = scalar_select %p711, %s32, 1
      %s713 = scalar_lea.vmem %s12, %s712
      %p714 = scmp.lt.s32.totalorder %s32, 1
      %s715 = scalar_select %p714, %s32, 1
      %s716 = scalar_lea.vmem %s13, %s715
      %p717 = scmp.lt.s32.totalorder %s31, 1
      %s718 = scalar_select %p717, %s31, 1
      %s719 = smul.addr %s718, 8
      %s720 = scalar_lea.vmem %s16, %s719
      %p722 = scmp.eq.s32.totalorder %s32, 0
      // Predicated region
      $region85: #{transformer_forward.1} parent=83 // pred_check
        %p723 = pneg %p722
      $region86: #{transformer_forward.1} parent=83 // pred_check_branch
        %725 = sbr.rel (%p723) target = $region88
      $region87: #{transformer_forward.1} parent=83 // pred_region
        %v726 = vld [vmem:[%s672] sm:$0xff]
        %vm727 = vcmask 261120
        %728 = vst.msk [vmem:[#allocation2] sm:$0xff] %vm727, %v726
      $region88: #{transformer_forward.1} parent=83 // pred_fallthru
        _
      %v729 = vld [vmem:[#allocation2] sm:$0xff]
      %v730 = vld [vmem:[%s1] sm:$0xff]
      %v731 = vpack.c.bf16 %v729, %v729
      %v732 = vld [vmem:[%s677] sm:$0xf]
      %v733 = vld [vmem:[%s677 + $0x4] sm:$0xf]
      %v734 = vld [vmem:[%s677 + $0x8] sm:$0xf]
      %v735 = vld [vmem:[%s677 + $0xc] sm:$0xf]
      %v736 = vld [vmem:[%s680] sm:$0x1]
      %v738 = vlaneseq
      %v739 = vshrl.u32 %v738, 7
      %v740 = vsub.s32 0, %v739
      %v741 = vrot.slane %v736, %v740
      %v747 = vunpack.c.l.b16 %v732
      %v748 = vunpack.c.l.b16 %v733
      %v749 = vunpack.c.l.b16 %v734
      %v750 = vunpack.c.l.b16 %v735
      %v751 = vpack.c.b16 %v748, %v747
      %v752 = vpack.c.b16 %v750, %v749
      %vm755 = vcmask 261120
      %v757 = vsel %vm755, %v731, 0
      %759 = vmatprep.subr.bf16.mxu0 0
      %760 = vmatpush1.bf16.msra.mxu0 0
      %761 = vmatprep.subr.bf16.mxu0 0
      %762 = vmatpush1.bf16.msra.mxu0 0
      %763 = vmatprep.subr.bf16.mxu0 0
      %764 = vmatpush1.bf16.msra.mxu0 0
      %765 = vmatprep.subr.bf16.mxu0 0
      %766 = vmatpush1.bf16.msra.mxu0 0
      %767 = vmatprep.subr.bf16.mxu0 0
      %768 = vmatpush1.bf16.msra.mxu0 0
      %769 = vmatprep.subr.bf16.mxu0 0
      %770 = vmatpush1.bf16.msra.mxu0 0
      %771 = vmatprep.subr.bf16.mxu0 0
      %772 = vmatpush1.bf16.msra.mxu0 %v752
      %773 = vmatprep.subr.bf16.mxu0 0
      %774 = vmatpush1.bf16.msra.mxu0 %v751
      %775 = vmatprep.subr.bf16.mxu0 0
      %776 = vmatpush2.bf16.msra.mxu0 0
      %777 = vmatprep.subr.bf16.mxu0 0
      %778 = vmatpush2.bf16.msra.mxu0 0
      %779 = vmatprep.subr.bf16.mxu0 0
      %780 = vmatpush2.bf16.msra.mxu0 0
      %781 = vmatprep.subr.bf16.mxu0 0
      %782 = vmatpush2.bf16.msra.mxu0 0
      %783 = vmatprep.subr.bf16.mxu0 0
      %784 = vmatpush2.bf16.msra.mxu0 0
      %785 = vmatprep.subr.bf16.mxu0 0
      %786 = vmatpush2.bf16.msra.mxu0 0
      %787 = vmatprep.subr.bf16.mxu0 0
      %788 = vmatpush2.bf16.msra.mxu0 0
      %789 = vmatprep.subr.bf16.mxu0 0
      %790 = vmatpush2.bf16.msra.mxu0 0
      %791 = vmatprep.mubr.bf16.mxu0 0
      %792 = vmatmul.mubr.bf16.gmra.mxu0 %v757
      %v793 = vpop.f32.mrf.mxu0
      %v794 = vadd.f32 %v741, %v793
      %v795 = vpop.f32.mrf.mxu0
      %v796 = vpop.f32.mrf.mxu0
      %v797 = vpop.f32.mrf.mxu0
      %798 = vdwg.mxu0
      %v799 = vpack.c.bf16 %v794, %v794
      %801 = vrot.lane.b32.xlu0 %v799, 96
      %v802 = vpop.permute.xlu0 %801
      %vm803 = vcmask 64512
      %v805 = vsel %vm803, %v799, 0
      %v808 = vsel %vm803, %v802, 0
      %810 = vmatprep.subr.bf16.mxu0 0
      %811 = vmatpush1.bf16.xpose.msra.mxu0 0
      %812 = vmatprep.subr.bf16.mxu0 0
      %813 = vmatpush1.bf16.xpose.msra.mxu0 0
      %814 = vmatprep.subr.bf16.mxu0 0
      %815 = vmatpush1.bf16.xpose.msra.mxu0 0
      %816 = vmatprep.subr.bf16.mxu0 0
      %817 = vmatpush1.bf16.xpose.msra.mxu0 0
      %818 = vmatprep.subr.bf16.mxu0 0
      %819 = vmatpush1.bf16.xpose.msra.mxu0 0
      %820 = vmatprep.subr.bf16.mxu0 0
      %821 = vmatpush1.bf16.xpose.msra.mxu0 0
      %822 = vmatprep.subr.bf16.mxu0 0
      %823 = vmatpush1.bf16.xpose.msra.mxu0 0
      %824 = vmatprep.subr.bf16.mxu0 0
      %825 = vmatpush1.bf16.xpose.msra.mxu0 %v808
      %826 = vmatprep.subr.bf16.mxu0 0
      %827 = vmatpush2.bf16.xpose.msra.mxu0 0
      %828 = vmatprep.subr.bf16.mxu0 0
      %829 = vmatpush2.bf16.xpose.msra.mxu0 0
      %830 = vmatprep.subr.bf16.mxu0 0
      %831 = vmatpush2.bf16.xpose.msra.mxu0 0
      %832 = vmatprep.subr.bf16.mxu0 0
      %833 = vmatpush2.bf16.xpose.msra.mxu0 0
      %834 = vmatprep.subr.bf16.mxu0 0
      %835 = vmatpush2.bf16.xpose.msra.mxu0 0
      %836 = vmatprep.subr.bf16.mxu0 0
      %837 = vmatpush2.bf16.xpose.msra.mxu0 0
      %838 = vmatprep.subr.bf16.mxu0 0
      %839 = vmatpush2.bf16.xpose.msra.mxu0 0
      %840 = vmatprep.subr.bf16.mxu0 0
      %841 = vmatpush2.bf16.xpose.msra.mxu0 0
      %842 = vmatprep.mubr.bf16.mxu0 0
      %843 = vmatmul.mubr.bf16.gmra.mxu0 %v805
      %v844 = vpop.f32.mrf.mxu0
      %v845 = vadd.f32 0.0, %v844
      %v846 = vpop.f32.mrf.mxu0
      %v847 = vpop.f32.mrf.mxu0
      %v848 = vpop.f32.mrf.mxu0
      %849 = vdwg.mxu0
      %v850 = vmul.f32 %v845, 0.35355338
      %v851 = vadd.f32 %v850, %v730
      %v852 = vsel %vm803, %v851, -inf
      %853 = vmax.xlane.f32.xlu0 %v852
      %v854 = vpop.xlane.xlu0 %853
      %v855 = vsub.f32 %v851, %v854
      %v856 = vmul.f32 %v855, 1.442695
      %v857 = vpow.pop %v856
      %v858 = vsel %vm803, %v857, 0.0
      %859 = vadd.xlane.f32.xlu0 %v858
      %v860 = vpop.xlane.xlu0 %859
      %v861 = vrcp.pop %v860
      %v862 = vmul.f32 %v857, %v861
      %v863 = vpack.c.bf16 %v862, %v862
      %864 = vrot.lane.b32.xlu0 %v799, 64
      %v865 = vpop.permute.xlu0 %864
      %v867 = vsel %vm803, %v863, 0
      %vm869 = vcmask 1043456
      %v871 = vsel %vm869, %v865, 0
      %873 = vmatprep.subr.bf16.mxu0 0
      %874 = vmatpush1.bf16.msra.mxu0 0
      %875 = vmatprep.subr.bf16.mxu0 0
      %876 = vmatpush1.bf16.msra.mxu0 0
      %877 = vmatprep.subr.bf16.mxu0 0
      %878 = vmatpush1.bf16.msra.mxu0 0
      %879 = vmatprep.subr.bf16.mxu0 0
      %880 = vmatpush1.bf16.msra.mxu0 0
      %881 = vmatprep.subr.bf16.mxu0 0
      %882 = vmatpush1.bf16.msra.mxu0 0
      %883 = vmatprep.subr.bf16.mxu0 0
      %884 = vmatpush1.bf16.msra.mxu0 0
      %885 = vmatprep.subr.bf16.mxu0 0
      %886 = vmatpush1.bf16.msra.mxu0 0
      %887 = vmatprep.subr.bf16.mxu0 0
      %888 = vmatpush1.bf16.msra.mxu0 %v871
      %889 = vmatprep.subr.bf16.mxu0 0
      %890 = vmatpush2.bf16.msra.mxu0 0
      %891 = vmatprep.subr.bf16.mxu0 0
      %892 = vmatpush2.bf16.msra.mxu0 0
      %893 = vmatprep.subr.bf16.mxu0 0
      %894 = vmatpush2.bf16.msra.mxu0 0
      %895 = vmatprep.subr.bf16.mxu0 0
      %896 = vmatpush2.bf16.msra.mxu0 0
      %897 = vmatprep.subr.bf16.mxu0 0
      %898 = vmatpush2.bf16.msra.mxu0 0
      %899 = vmatprep.subr.bf16.mxu0 0
      %900 = vmatpush2.bf16.msra.mxu0 0
      %901 = vmatprep.subr.bf16.mxu0 0
      %902 = vmatpush2.bf16.msra.mxu0 0
      %903 = vmatprep.subr.bf16.mxu0 0
      %904 = vmatpush2.bf16.msra.mxu0 0
      %905 = vmatprep.mubr.bf16.mxu0 0
      %906 = vmatmul.mubr.bf16.gmra.mxu0 %v867
      %v907 = vpop.f32.mrf.mxu0
      %v908 = vadd.f32 0.0, %v907
      %v909 = vpop.f32.mrf.mxu0
      %v910 = vpop.f32.mrf.mxu0
      %v911 = vpop.f32.mrf.mxu0
      %912 = vdwg.mxu0
      %913 = vrot.lane.b32.xlu0 %v799, 120
      %v914 = vpop.permute.xlu0 %913
      %915 = vrot.lane.b32.xlu0 %v799, 88
      %v916 = vpop.permute.xlu0 %915
      %v918 = vsel %vm803, %v914, 0
      %v921 = vsel %vm803, %v916, 0
      %923 = vmatprep.subr.bf16.mxu0 0
      %924 = vmatpush1.bf16.xpose.msra.mxu0 0
      %925 = vmatprep.subr.bf16.mxu0 0
      %926 = vmatpush1.bf16.xpose.msra.mxu0 0
      %927 = vmatprep.subr.bf16.mxu0 0
      %928 = vmatpush1.bf16.xpose.msra.mxu0 0
      %929 = vmatprep.subr.bf16.mxu0 0
      %930 = vmatpush1.bf16.xpose.msra.mxu0 0
      %931 = vmatprep.subr.bf16.mxu0 0
      %932 = vmatpush1.bf16.xpose.msra.mxu0 0
      %933 = vmatprep.subr.bf16.mxu0 0
      %934 = vmatpush1.bf16.xpose.msra.mxu0 0
      %935 = vmatprep.subr.bf16.mxu0 0
      %936 = vmatpush1.bf16.xpose.msra.mxu0 0
      %937 = vmatprep.subr.bf16.mxu0 0
      %938 = vmatpush1.bf16.xpose.msra.mxu0 %v921
      %939 = vmatprep.subr.bf16.mxu0 0
      %940 = vmatpush2.bf16.xpose.msra.mxu0 0
      %941 = vmatprep.subr.bf16.mxu0 0
      %942 = vmatpush2.bf16.xpose.msra.mxu0 0
      %943 = vmatprep.subr.bf16.mxu0 0
      %944 = vmatpush2.bf16.xpose.msra.mxu0 0
      %945 = vmatprep.subr.bf16.mxu0 0
      %946 = vmatpush2.bf16.xpose.msra.mxu0 0
      %947 = vmatprep.subr.bf16.mxu0 0
      %948 = vmatpush2.bf16.xpose.msra.mxu0 0
      %949 = vmatprep.subr.bf16.mxu0 0
      %950 = vmatpush2.bf16.xpose.msra.mxu0 0
      %951 = vmatprep.subr.bf16.mxu0 0
      %952 = vmatpush2.bf16.xpose.msra.mxu0 0
      %953 = vmatprep.subr.bf16.mxu0 0
      %954 = vmatpush2.bf16.xpose.msra.mxu0 0
      %955 = vmatprep.mubr.bf16.mxu0 0
      %956 = vmatmul.mubr.bf16.gmra.mxu0 %v918
      %v957 = vpop.f32.mrf.mxu0
      %v958 = vadd.f32 0.0, %v957
      %v959 = vpop.f32.mrf.mxu0
      %v960 = vpop.f32.mrf.mxu0
      %v961 = vpop.f32.mrf.mxu0
      %962 = vdwg.mxu0
      %v963 = vmul.f32 %v958, 0.35355338
      %v964 = vadd.f32 %v963, %v730
      %v965 = vsel %vm803, %v964, -inf
      %966 = vmax.xlane.f32.xlu0 %v965
      %v967 = vpop.xlane.xlu0 %966
      %v968 = vsub.f32 %v964, %v967
      %v969 = vmul.f32 %v968, 1.442695
      %v970 = vpow.pop %v969
      %v971 = vsel %vm803, %v970, 0.0
      %972 = vadd.xlane.f32.xlu0 %v971
      %v973 = vpop.xlane.xlu0 %972
      %v974 = vrcp.pop %v973
      %v975 = vmul.f32 %v970, %v974
      %v976 = vpack.c.bf16 %v975, %v975
      %977 = vrot.lane.b32.xlu0 %v799, 56
      %v978 = vpop.permute.xlu0 %977
      %v980 = vsel %vm803, %v976, 0
      %v983 = vsel %vm869, %v978, 0
      %985 = vmatprep.subr.bf16.mxu0 0
      %986 = vmatpush1.bf16.msra.mxu0 0
      %987 = vmatprep.subr.bf16.mxu0 0
      %988 = vmatpush1.bf16.msra.mxu0 0
      %989 = vmatprep.subr.bf16.mxu0 0
      %990 = vmatpush1.bf16.msra.mxu0 0
      %991 = vmatprep.subr.bf16.mxu0 0
      %992 = vmatpush1.bf16.msra.mxu0 0
      %993 = vmatprep.subr.bf16.mxu0 0
      %994 = vmatpush1.bf16.msra.mxu0 0
      %995 = vmatprep.subr.bf16.mxu0 0
      %996 = vmatpush1.bf16.msra.mxu0 0
      %997 = vmatprep.subr.bf16.mxu0 0
      %998 = vmatpush1.bf16.msra.mxu0 0
      %999 = vmatprep.subr.bf16.mxu0 0
      %1000 = vmatpush1.bf16.msra.mxu0 %v983
      %1001 = vmatprep.subr.bf16.mxu0 0
      %1002 = vmatpush2.bf16.msra.mxu0 0
      %1003 = vmatprep.subr.bf16.mxu0 0
      %1004 = vmatpush2.bf16.msra.mxu0 0
      %1005 = vmatprep.subr.bf16.mxu0 0
      %1006 = vmatpush2.bf16.msra.mxu0 0
      %1007 = vmatprep.subr.bf16.mxu0 0
      %1008 = vmatpush2.bf16.msra.mxu0 0
      %1009 = vmatprep.subr.bf16.mxu0 0
      %1010 = vmatpush2.bf16.msra.mxu0 0
      %1011 = vmatprep.subr.bf16.mxu0 0
      %1012 = vmatpush2.bf16.msra.mxu0 0
      %1013 = vmatprep.subr.bf16.mxu0 0
      %1014 = vmatpush2.bf16.msra.mxu0 0
      %1015 = vmatprep.subr.bf16.mxu0 0
      %1016 = vmatpush2.bf16.msra.mxu0 0
      %1017 = vmatprep.mubr.bf16.mxu0 0
      %1018 = vmatmul.mubr.bf16.gmra.mxu0 %v980
      %v1019 = vpop.f32.mrf.mxu0
      %v1020 = vadd.f32 0.0, %v1019
      %v1021 = vpop.f32.mrf.mxu0
      %v1022 = vpop.f32.mrf.mxu0
      %v1023 = vpop.f32.mrf.mxu0
      %1024 = vdwg.mxu0
      %1025 = vrot.lane.b32.xlu0 %v799, 112
      %v1026 = vpop.permute.xlu0 %1025
      %1027 = vrot.lane.b32.xlu0 %v799, 80
      %v1028 = vpop.permute.xlu0 %1027
      %v1030 = vsel %vm803, %v1026, 0
      %v1033 = vsel %vm803, %v1028, 0
      %1035 = vmatprep.subr.bf16.mxu0 0
      %1036 = vmatpush1.bf16.xpose.msra.mxu0 0
      %1037 = vmatprep.subr.bf16.mxu0 0
      %1038 = vmatpush1.bf16.xpose.msra.mxu0 0
      %1039 = vmatprep.subr.bf16.mxu0 0
      %1040 = vmatpush1.bf16.xpose.msra.mxu0 0
      %1041 = vmatprep.subr.bf16.mxu0 0
      %1042 = vmatpush1.bf16.xpose.msra.mxu0 0
      %1043 = vmatprep.subr.bf16.mxu0 0
      %1044 = vmatpush1.bf16.xpose.msra.mxu0 0
      %1045 = vmatprep.subr.bf16.mxu0 0
      %1046 = vmatpush1.bf16.xpose.msra.mxu0 0
      %1047 = vmatprep.subr.bf16.mxu0 0
      %1048 = vmatpush1.bf16.xpose.msra.mxu0 0
      %1049 = vmatprep.subr.bf16.mxu0 0
      %1050 = vmatpush1.bf16.xpose.msra.mxu0 %v1033
      %1051 = vmatprep.subr.bf16.mxu0 0
      %1052 = vmatpush2.bf16.xpose.msra.mxu0 0
      %1053 = vmatprep.subr.bf16.mxu0 0
      %1054 = vmatpush2.bf16.xpose.msra.mxu0 0
      %1055 = vmatprep.subr.bf16.mxu0 0
      %1056 = vmatpush2.bf16.xpose.msra.mxu0 0
      %1057 = vmatprep.subr.bf16.mxu0 0
      %1058 = vmatpush2.bf16.xpose.msra.mxu0 0
      %1059 = vmatprep.subr.bf16.mxu0 0
      %1060 = vmatpush2.bf16.xpose.msra.mxu0 0
      %1061 = vmatprep.subr.bf16.mxu0 0
      %1062 = vmatpush2.bf16.xpose.msra.mxu0 0
      %1063 = vmatprep.subr.bf16.mxu0 0
      %1064 = vmatpush2.bf16.xpose.msra.mxu0 0
      %1065 = vmatprep.subr.bf16.mxu0 0
      %1066 = vmatpush2.bf16.xpose.msra.mxu0 0
      %1067 = vmatprep.mubr.bf16.mxu0 0
      %1068 = vmatmul.mubr.bf16.gmra.mxu0 %v1030
      %v1069 = vpop.f32.mrf.mxu0
      %v1070 = vadd.f32 0.0, %v1069
      %v1071 = vpop.f32.mrf.mxu0
      %v1072 = vpop.f32.mrf.mxu0
      %v1073 = vpop.f32.mrf.mxu0
      %1074 = vdwg.mxu0
      %v1075 = vmul.f32 %v1070, 0.35355338
      %v1076 = vadd.f32 %v1075, %v730
      %v1077 = vsel %vm803, %v1076, -inf
      %1078 = vmax.xlane.f32.xlu0 %v1077
      %v1079 = vpop.xlane.xlu0 %1078
      %v1080 = vsub.f32 %v1076, %v1079
      %v1081 = vmul.f32 %v1080, 1.442695
      %v1082 = vpow.pop %v1081
      %v1083 = vsel %vm803, %v1082, 0.0
      %1084 = vadd.xlane.f32.xlu0 %v1083
      %v1085 = vpop.xlane.xlu0 %1084
      %v1086 = vrcp.pop %v1085
      %v1087 = vmul.f32 %v1082, %v1086
      %v1088 = vpack.c.bf16 %v1087, %v1087
      %1089 = vrot.lane.b32.xlu0 %v799, 48
      %v1090 = vpop.permute.xlu0 %1089
      %v1092 = vsel %vm803, %v1088, 0
      %v1095 = vsel %vm869, %v1090, 0
      %1097 = vmatprep.subr.bf16.mxu0 0
      %1098 = vmatpush1.bf16.msra.mxu0 0
      %1099 = vmatprep.subr.bf16.mxu0 0
      %1100 = vmatpush1.bf16.msra.mxu0 0
      %1101 = vmatprep.subr.bf16.mxu0 0
      %1102 = vmatpush1.bf16.msra.mxu0 0
      %1103 = vmatprep.subr.bf16.mxu0 0
      %1104 = vmatpush1.bf16.msra.mxu0 0
      %1105 = vmatprep.subr.bf16.mxu0 0
      %1106 = vmatpush1.bf16.msra.mxu0 0
      %1107 = vmatprep.subr.bf16.mxu0 0
      %1108 = vmatpush1.bf16.msra.mxu0 0
      %1109 = vmatprep.subr.bf16.mxu0 0
      %1110 = vmatpush1.bf16.msra.mxu0 0
      %1111 = vmatprep.subr.bf16.mxu0 0
      %1112 = vmatpush1.bf16.msra.mxu0 %v1095
      %1113 = vmatprep.subr.bf16.mxu0 0
      %1114 = vmatpush2.bf16.msra.mxu0 0
      %1115 = vmatprep.subr.bf16.mxu0 0
      %1116 = vmatpush2.bf16.msra.mxu0 0
      %1117 = vmatprep.subr.bf16.mxu0 0
      %1118 = vmatpush2.bf16.msra.mxu0 0
      %1119 = vmatprep.subr.bf16.mxu0 0
      %1120 = vmatpush2.bf16.msra.mxu0 0
      %1121 = vmatprep.subr.bf16.mxu0 0
      %1122 = vmatpush2.bf16.msra.mxu0 0
      %1123 = vmatprep.subr.bf16.mxu0 0
      %1124 = vmatpush2.bf16.msra.mxu0 0
      %1125 = vmatprep.subr.bf16.mxu0 0
      %1126 = vmatpush2.bf16.msra.mxu0 0
      %1127 = vmatprep.subr.bf16.mxu0 0
      %1128 = vmatpush2.bf16.msra.mxu0 0
      %1129 = vmatprep.mubr.bf16.mxu0 0
      %1130 = vmatmul.mubr.bf16.gmra.mxu0 %v1092
      %v1131 = vpop.f32.mrf.mxu0
      %v1132 = vadd.f32 0.0, %v1131
      %v1133 = vpop.f32.mrf.mxu0
      %v1134 = vpop.f32.mrf.mxu0
      %v1135 = vpop.f32.mrf.mxu0
      %1136 = vdwg.mxu0
      %1137 = vrot.lane.b32.xlu0 %v799, 104
      %v1138 = vpop.permute.xlu0 %1137
      %1139 = vrot.lane.b32.xlu0 %v799, 72
      %v1140 = vpop.permute.xlu0 %1139
      %v1142 = vsel %vm803, %v1138, 0
      %v1145 = vsel %vm803, %v1140, 0
      %1147 = vmatprep.subr.bf16.mxu0 0
      %1148 = vmatpush1.bf16.xpose.msra.mxu0 0
      %1149 = vmatprep.subr.bf16.mxu0 0
      %1150 = vmatpush1.bf16.xpose.msra.mxu0 0
      %1151 = vmatprep.subr.bf16.mxu0 0
      %1152 = vmatpush1.bf16.xpose.msra.mxu0 0
      %1153 = vmatprep.subr.bf16.mxu0 0
      %1154 = vmatpush1.bf16.xpose.msra.mxu0 0
      %1155 = vmatprep.subr.bf16.mxu0 0
      %1156 = vmatpush1.bf16.xpose.msra.mxu0 0
      %1157 = vmatprep.subr.bf16.mxu0 0
      %1158 = vmatpush1.bf16.xpose.msra.mxu0 0
      %1159 = vmatprep.subr.bf16.mxu0 0
      %1160 = vmatpush1.bf16.xpose.msra.mxu0 0
      %1161 = vmatprep.subr.bf16.mxu0 0
      %1162 = vmatpush1.bf16.xpose.msra.mxu0 %v1145
      %1163 = vmatprep.subr.bf16.mxu0 0
      %1164 = vmatpush2.bf16.xpose.msra.mxu0 0
      %1165 = vmatprep.subr.bf16.mxu0 0
      %1166 = vmatpush2.bf16.xpose.msra.mxu0 0
      %1167 = vmatprep.subr.bf16.mxu0 0
      %1168 = vmatpush2.bf16.xpose.msra.mxu0 0
      %1169 = vmatprep.subr.bf16.mxu0 0
      %1170 = vmatpush2.bf16.xpose.msra.mxu0 0
      %1171 = vmatprep.subr.bf16.mxu0 0
      %1172 = vmatpush2.bf16.xpose.msra.mxu0 0
      %1173 = vmatprep.subr.bf16.mxu0 0
      %1174 = vmatpush2.bf16.xpose.msra.mxu0 0
      %1175 = vmatprep.subr.bf16.mxu0 0
      %1176 = vmatpush2.bf16.xpose.msra.mxu0 0
      %1177 = vmatprep.subr.bf16.mxu0 0
      %1178 = vmatpush2.bf16.xpose.msra.mxu0 0
      %1179 = vmatprep.mubr.bf16.mxu0 0
      %1180 = vmatmul.mubr.bf16.gmra.mxu0 %v1142
      %v1181 = vpop.f32.mrf.mxu0
      %v1182 = vadd.f32 0.0, %v1181
      %v1183 = vpop.f32.mrf.mxu0
      %v1184 = vpop.f32.mrf.mxu0
      %v1185 = vpop.f32.mrf.mxu0
      %1186 = vdwg.mxu0
      %v1187 = vmul.f32 %v1182, 0.35355338
      %v1188 = vadd.f32 %v1187, %v730
      %v1189 = vsel %vm803, %v1188, -inf
      %1190 = vmax.xlane.f32.xlu0 %v1189
      %v1191 = vpop.xlane.xlu0 %1190
      %v1192 = vsub.f32 %v1188, %v1191
      %v1193 = vmul.f32 %v1192, 1.442695
      %v1194 = vpow.pop %v1193
      %v1195 = vsel %vm803, %v1194, 0.0
      %1196 = vadd.xlane.f32.xlu0 %v1195
      %v1197 = vpop.xlane.xlu0 %1196
      %v1198 = vrcp.pop %v1197
      %v1199 = vmul.f32 %v1194, %v1198
      %v1200 = vpack.c.bf16 %v1199, %v1199
      %1201 = vrot.lane.b32.xlu0 %v799, 40
      %v1202 = vpop.permute.xlu0 %1201
      %v1204 = vsel %vm803, %v1200, 0
      %v1207 = vsel %vm869, %v1202, 0
      %1209 = vmatprep.subr.bf16.mxu0 0
      %1210 = vmatpush1.bf16.msra.mxu0 0
      %1211 = vmatprep.subr.bf16.mxu0 0
      %1212 = vmatpush1.bf16.msra.mxu0 0
      %1213 = vmatprep.subr.bf16.mxu0 0
      %1214 = vmatpush1.bf16.msra.mxu0 0
      %1215 = vmatprep.subr.bf16.mxu0 0
      %1216 = vmatpush1.bf16.msra.mxu0 0
      %1217 = vmatprep.subr.bf16.mxu0 0
      %1218 = vmatpush1.bf16.msra.mxu0 0
      %1219 = vmatprep.subr.bf16.mxu0 0
      %1220 = vmatpush1.bf16.msra.mxu0 0
      %1221 = vmatprep.subr.bf16.mxu0 0
      %1222 = vmatpush1.bf16.msra.mxu0 0
      %1223 = vmatprep.subr.bf16.mxu0 0
      %1224 = vmatpush1.bf16.msra.mxu0 %v1207
      %1225 = vmatprep.subr.bf16.mxu0 0
      %1226 = vmatpush2.bf16.msra.mxu0 0
      %1227 = vmatprep.subr.bf16.mxu0 0
      %1228 = vmatpush2.bf16.msra.mxu0 0
      %1229 = vmatprep.subr.bf16.mxu0 0
      %1230 = vmatpush2.bf16.msra.mxu0 0
      %1231 = vmatprep.subr.bf16.mxu0 0
      %1232 = vmatpush2.bf16.msra.mxu0 0
      %1233 = vmatprep.subr.bf16.mxu0 0
      %1234 = vmatpush2.bf16.msra.mxu0 0
      %1235 = vmatprep.subr.bf16.mxu0 0
      %1236 = vmatpush2.bf16.msra.mxu0 0
      %1237 = vmatprep.subr.bf16.mxu0 0
      %1238 = vmatpush2.bf16.msra.mxu0 0
      %1239 = vmatprep.subr.bf16.mxu0 0
      %1240 = vmatpush2.bf16.msra.mxu0 0
      %1241 = vmatprep.mubr.bf16.mxu0 0
      %1242 = vmatmul.mubr.bf16.gmra.mxu0 %v1204
      %v1243 = vpop.f32.mrf.mxu0
      %v1244 = vadd.f32 0.0, %v1243
      %v1245 = vpop.f32.mrf.mxu0
      %v1246 = vpop.f32.mrf.mxu0
      %v1247 = vpop.f32.mrf.mxu0
      %1248 = vdwg.mxu0
      %1250 = vrot.lane.b32.xlu0 %v1020, 8
      %v1251 = vpop.permute.xlu0 %1250
      %1254 = vrot.lane.b32.xlu0 %v1132, 16
      %v1255 = vpop.permute.xlu0 %1254
      %1258 = vrot.lane.b32.xlu0 %v1244, 24
      %v1259 = vpop.permute.xlu0 %1258
      %v1261 = vsel %vm803, %v908, %v1251
      %vm1262 = vcmask 130048
      %v1263 = vsel %vm1262, %v1261, %v1255
      %vm1264 = vcmask 195584
      %v1265 = vsel %vm1264, %v1263, %v1259
      %v1266 = vpack.c.bf16 %v1265, %v1265
      %v1267 = vld [vmem:[%s685] sm:$0xf]
      %v1268 = vld [vmem:[%s685 + $0x4] sm:$0xf]
      %v1269 = vld [vmem:[%s685 + $0x8] sm:$0xf]
      %v1270 = vld [vmem:[%s685 + $0xc] sm:$0xf]
      %v1271 = vld [vmem:[%s688] sm:$0x1]
      %v1273 = vlaneseq
      %v1274 = vshrl.u32 %v1273, 7
      %v1275 = vsub.s32 0, %v1274
      %v1276 = vrot.slane %v1271, %v1275
      %v1282 = vunpack.c.l.b16 %v1267
      %v1283 = vunpack.c.l.b16 %v1268
      %v1284 = vunpack.c.l.b16 %v1269
      %v1285 = vunpack.c.l.b16 %v1270
      %v1286 = vpack.c.b16 %v1283, %v1282
      %v1287 = vpack.c.b16 %v1285, %v1284
      %v1291 = vsel %vm755, %v1266, 0
      %1293 = vmatprep.subr.bf16.mxu0 0
      %1294 = vmatpush1.bf16.msra.mxu0 0
      %1295 = vmatprep.subr.bf16.mxu0 0
      %1296 = vmatpush1.bf16.msra.mxu0 0
      %1297 = vmatprep.subr.bf16.mxu0 0
      %1298 = vmatpush1.bf16.msra.mxu0 0
      %1299 = vmatprep.subr.bf16.mxu0 0
      %1300 = vmatpush1.bf16.msra.mxu0 0
      %1301 = vmatprep.subr.bf16.mxu0 0
      %1302 = vmatpush1.bf16.msra.mxu0 0
      %1303 = vmatprep.subr.bf16.mxu0 0
      %1304 = vmatpush1.bf16.msra.mxu0 0
      %1305 = vmatprep.subr.bf16.mxu0 0
      %1306 = vmatpush1.bf16.msra.mxu0 %v1287
      %1307 = vmatprep.subr.bf16.mxu0 0
      %1308 = vmatpush1.bf16.msra.mxu0 %v1286
      %1309 = vmatprep.subr.bf16.mxu0 0
      %1310 = vmatpush2.bf16.msra.mxu0 0
      %1311 = vmatprep.subr.bf16.mxu0 0
      %1312 = vmatpush2.bf16.msra.mxu0 0
      %1313 = vmatprep.subr.bf16.mxu0 0
      %1314 = vmatpush2.bf16.msra.mxu0 0
      %1315 = vmatprep.subr.bf16.mxu0 0
      %1316 = vmatpush2.bf16.msra.mxu0 0
      %1317 = vmatprep.subr.bf16.mxu0 0
      %1318 = vmatpush2.bf16.msra.mxu0 0
      %1319 = vmatprep.subr.bf16.mxu0 0
      %1320 = vmatpush2.bf16.msra.mxu0 0
      %1321 = vmatprep.subr.bf16.mxu0 0
      %1322 = vmatpush2.bf16.msra.mxu0 0
      %1323 = vmatprep.subr.bf16.mxu0 0
      %1324 = vmatpush2.bf16.msra.mxu0 0
      %1325 = vmatprep.mubr.bf16.mxu0 0
      %1326 = vmatmul.mubr.bf16.gmra.mxu0 %v1291
      %v1327 = vpop.f32.mrf.mxu0
      %v1328 = vadd.f32 %v1276, %v1327
      %v1329 = vpop.f32.mrf.mxu0
      %v1330 = vpop.f32.mrf.mxu0
      %v1331 = vpop.f32.mrf.mxu0
      %1332 = vdwg.mxu0
      %v1333 = vadd.f32 %v729, %v1328
      %v1334 = vld [vmem:[%s707] sm:$0x1]
      %v1335 = vld [vmem:[%s710] sm:$0x1]
      %v1336 = vsel %vm755, %v1333, 0.0
      %1337 = vadd.xlane.f32.xlu0 %v1336
      %v1338 = vpop.xlane.xlu0 %1337
      %v1339 = vrcp.pop 32.0
      %v1340 = vmul.f32 %v1338, %v1339
      %v1341 = vsub.f32 %v1333, %v1340
      %v1342 = vmul.f32 %v1341, %v1341
      %v1343 = vsel %vm755, %v1342, 0.0
      %1344 = vadd.xlane.f32.xlu0 %v1343
      %v1345 = vpop.xlane.xlu0 %1344
      %v1346 = vmul.f32 %v1345, %v1339
      %v1347 = vadd.f32 %v1346, 1e-05
      %v1348 = vrsqrt.pop %v1347
      %v1349 = vmul.f32 %v1341, %v1348
      %v1351 = vlaneseq
      %v1352 = vshrl.u32 %v1351, 7
      %v1353 = vsub.s32 0, %v1352
      %v1354 = vrot.slane %v1334, %v1353
      %v1356 = vmul.f32 %v1349, %v1354
      %v1358 = vlaneseq
      %v1359 = vshrl.u32 %v1358, 7
      %v1360 = vsub.s32 0, %v1359
      %v1361 = vrot.slane %v1335, %v1360
      %v1363 = vadd.f32 %v1356, %v1361
      %v1364 = vpack.c.bf16 %v1363, %v1363
      %v1365 = vld [vmem:[%s693] sm:$0xf]
      %v1366 = vld [vmem:[%s693 + $0x4] sm:$0xf]
      %v1367 = vld [vmem:[%s693 + $0x8] sm:$0xf]
      %v1368 = vld [vmem:[%s693 + $0xc] sm:$0xf]
      %v1369 = vld [vmem:[%s696] sm:$0x1]
      %v1371 = vlaneseq
      %v1372 = vshrl.u32 %v1371, 7
      %v1373 = vsub.s32 0, %v1372
      %v1374 = vrot.slane %v1369, %v1373
      %v1380 = vunpack.c.l.b16 %v1365
      %v1381 = vunpack.c.l.b16 %v1366
      %v1382 = vunpack.c.l.b16 %v1367
      %v1383 = vunpack.c.l.b16 %v1368
      %v1384 = vpack.c.b16 %v1381, %v1380
      %v1385 = vpack.c.b16 %v1383, %v1382
      %v1389 = vsel %vm755, %v1364, 0
      %1391 = vmatprep.subr.bf16.mxu0 0
      %1392 = vmatpush1.bf16.msra.mxu0 0
      %1393 = vmatprep.subr.bf16.mxu0 0
      %1394 = vmatpush1.bf16.msra.mxu0 0
      %1395 = vmatprep.subr.bf16.mxu0 0
      %1396 = vmatpush1.bf16.msra.mxu0 0
      %1397 = vmatprep.subr.bf16.mxu0 0
      %1398 = vmatpush1.bf16.msra.mxu0 0
      %1399 = vmatprep.subr.bf16.mxu0 0
      %1400 = vmatpush1.bf16.msra.mxu0 0
      %1401 = vmatprep.subr.bf16.mxu0 0
      %1402 = vmatpush1.bf16.msra.mxu0 0
      %1403 = vmatprep.subr.bf16.mxu0 0
      %1404 = vmatpush1.bf16.msra.mxu0 %v1385
      %1405 = vmatprep.subr.bf16.mxu0 0
      %1406 = vmatpush1.bf16.msra.mxu0 %v1384
      %1407 = vmatprep.subr.bf16.mxu0 0
      %1408 = vmatpush2.bf16.msra.mxu0 0
      %1409 = vmatprep.subr.bf16.mxu0 0
      %1410 = vmatpush2.bf16.msra.mxu0 0
      %1411 = vmatprep.subr.bf16.mxu0 0
      %1412 = vmatpush2.bf16.msra.mxu0 0
      %1413 = vmatprep.subr.bf16.mxu0 0
      %1414 = vmatpush2.bf16.msra.mxu0 0
      %1415 = vmatprep.subr.bf16.mxu0 0
      %1416 = vmatpush2.bf16.msra.mxu0 0
      %1417 = vmatprep.subr.bf16.mxu0 0
      %1418 = vmatpush2.bf16.msra.mxu0 0
      %1419 = vmatprep.subr.bf16.mxu0 0
      %1420 = vmatpush2.bf16.msra.mxu0 0
      %1421 = vmatprep.subr.bf16.mxu0 0
      %1422 = vmatpush2.bf16.msra.mxu0 0
      %1423 = vmatprep.mubr.bf16.mxu0 0
      %1424 = vmatmul.mubr.bf16.gmra.mxu0 %v1389
      %v1425 = vpop.f32.mrf.mxu0
      %v1426 = vadd.f32 %v1374, %v1425
      %v1427 = vpop.f32.mrf.mxu0
      %v1428 = vpop.f32.mrf.mxu0
      %v1429 = vpop.f32.mrf.mxu0
      %1430 = vdwg.mxu0
      %v1431 = vmax.f32 %v1426, 0.0
      %v1432 = vpack.c.bf16 %v1431, %v1431
      %v1433 = vld [vmem:[%s701] sm:$0xf]
      %v1434 = vld [vmem:[%s701 + $0x4] sm:$0xf]
      %v1435 = vld [vmem:[%s701 + $0x8] sm:$0xf]
      %v1436 = vld [vmem:[%s701 + $0xc] sm:$0xf]
      %v1437 = vld [vmem:[%s701 + $0x10] sm:$0xf]
      %v1438 = vld [vmem:[%s701 + $0x14] sm:$0xf]
      %v1439 = vld [vmem:[%s701 + $0x18] sm:$0xf]
      %v1440 = vld [vmem:[%s701 + $0x1c] sm:$0xf]
      %v1441 = vld [vmem:[%s704] sm:$0x1]
      %v1443 = vlaneseq
      %v1444 = vshrl.u32 %v1443, 7
      %v1445 = vsub.s32 0, %v1444
      %v1446 = vrot.slane %v1441, %v1445
      %v1456 = vunpack.c.l.b16 %v1433
      %v1457 = vunpack.c.l.b16 %v1434
      %v1458 = vunpack.c.l.b16 %v1435
      %v1459 = vunpack.c.l.b16 %v1436
      %v1460 = vunpack.c.l.b16 %v1437
      %v1461 = vunpack.c.l.b16 %v1438
      %v1462 = vunpack.c.l.b16 %v1439
      %v1463 = vunpack.c.l.b16 %v1440
      %v1464 = vpack.c.b16 %v1457, %v1456
      %v1465 = vpack.c.b16 %v1459, %v1458
      %v1466 = vpack.c.b16 %v1461, %v1460
      %v1467 = vpack.c.b16 %v1463, %v1462
      %vm1472 = vcmask 523264
      %v1474 = vsel %vm1472, %v1432, 0
      %1476 = vmatprep.subr.bf16.mxu0 0
      %1477 = vmatpush1.bf16.msra.mxu0 0
      %1478 = vmatprep.subr.bf16.mxu0 0
      %1479 = vmatpush1.bf16.msra.mxu0 0
      %1480 = vmatprep.subr.bf16.mxu0 0
      %1481 = vmatpush1.bf16.msra.mxu0 0
      %1482 = vmatprep.subr.bf16.mxu0 0
      %1483 = vmatpush1.bf16.msra.mxu0 0
      %1484 = vmatprep.subr.bf16.mxu0 0
      %1485 = vmatpush1.bf16.msra.mxu0 %v1467
      %1486 = vmatprep.subr.bf16.mxu0 0
      %1487 = vmatpush1.bf16.msra.mxu0 %v1466
      %1488 = vmatprep.subr.bf16.mxu0 0
      %1489 = vmatpush1.bf16.msra.mxu0 %v1465
      %1490 = vmatprep.subr.bf16.mxu0 0
      %1491 = vmatpush1.bf16.msra.mxu0 %v1464
      %1492 = vmatprep.subr.bf16.mxu0 0
      %1493 = vmatpush2.bf16.msra.mxu0 0
      %1494 = vmatprep.subr.bf16.mxu0 0
      %1495 = vmatpush2.bf16.msra.mxu0 0
      %1496 = vmatprep.subr.bf16.mxu0 0
      %1497 = vmatpush2.bf16.msra.mxu0 0
      %1498 = vmatprep.subr.bf16.mxu0 0
      %1499 = vmatpush2.bf16.msra.mxu0 0
      %1500 = vmatprep.subr.bf16.mxu0 0
      %1501 = vmatpush2.bf16.msra.mxu0 0
      %1502 = vmatprep.subr.bf16.mxu0 0
      %1503 = vmatpush2.bf16.msra.mxu0 0
      %1504 = vmatprep.subr.bf16.mxu0 0
      %1505 = vmatpush2.bf16.msra.mxu0 0
      %1506 = vmatprep.subr.bf16.mxu0 0
      %1507 = vmatpush2.bf16.msra.mxu0 0
      %1508 = vmatprep.mubr.bf16.mxu0 0
      %1509 = vmatmul.mubr.bf16.gmra.mxu0 %v1474
      %v1510 = vpop.f32.mrf.mxu0
      %v1511 = vadd.f32 %v1446, %v1510
      %v1512 = vpop.f32.mrf.mxu0
      %v1513 = vpop.f32.mrf.mxu0
      %v1514 = vpop.f32.mrf.mxu0
      %1515 = vdwg.mxu0
      %v1516 = vadd.f32 %v1363, %v1511
      %v1517 = vld [vmem:[%s713] sm:$0x1]
      %v1518 = vld [vmem:[%s716] sm:$0x1]
      %v1519 = vsel %vm755, %v1516, 0.0
      %1520 = vadd.xlane.f32.xlu0 %v1519
      %v1521 = vpop.xlane.xlu0 %1520
      %v1522 = vmul.f32 %v1521, %v1339
      %v1523 = vsub.f32 %v1516, %v1522
      %v1524 = vmul.f32 %v1523, %v1523
      %v1525 = vsel %vm755, %v1524, 0.0
      %1526 = vadd.xlane.f32.xlu0 %v1525
      %v1527 = vpop.xlane.xlu0 %1526
      %v1528 = vmul.f32 %v1527, %v1339
      %v1529 = vadd.f32 %v1528, 1e-05
      %v1530 = vrsqrt.pop %v1529
      %v1531 = vmul.f32 %v1523, %v1530
      %v1533 = vlaneseq
      %v1534 = vshrl.u32 %v1533, 7
      %v1535 = vsub.s32 0, %v1534
      %v1536 = vrot.slane %v1517, %v1535
      %v1538 = vmul.f32 %v1531, %v1536
      %v1540 = vlaneseq
      %v1541 = vshrl.u32 %v1540, 7
      %v1542 = vsub.s32 0, %v1541
      %v1543 = vrot.slane %v1518, %v1542
      %v1545 = vadd.f32 %v1538, %v1543
      %1546 = vst.msk [vmem:[#allocation2] sm:$0xff] %vm755, %v1545
      %p1547 = scmp.eq.s32.totalorder %s32, 1
      // Predicated region
      $region89: #{transformer_forward.1} parent=83 // pred_check
        %p1548 = pneg %p1547
      $region90: #{transformer_forward.1} parent=83 // pred_check_branch
        %1550 = sbr.rel (%p1548) target = $region92
      $region91: #{transformer_forward.1} parent=83 // pred_region
        %v1551 = vpack.c.bf16 %v1545, %v1545
        %v1552 = vld [vmem:[%s14] sm:$0xf]
        %v1553 = vld [vmem:[%s14 + $0x4] sm:$0xf]
        %v1554 = vld [vmem:[%s14 + $0x8] sm:$0xf]
        %v1555 = vld [vmem:[%s14 + $0xc] sm:$0xf]
        %v1556 = vld [vmem:[%s15] sm:$0x1]
        %v1558 = vlaneseq
        %v1559 = vshrl.u32 %v1558, 7
        %v1560 = vsub.s32 0, %v1559
        %v1561 = vrot.slane %v1556, %v1560
        %v1567 = vunpack.c.l.b16 %v1552
        %v1568 = vunpack.c.l.b16 %v1553
        %v1569 = vunpack.c.l.b16 %v1554
        %v1570 = vunpack.c.l.b16 %v1555
        %v1571 = vpack.c.b16 %v1568, %v1567
        %v1572 = vpack.c.b16 %v1570, %v1569
        %v1576 = vsel %vm755, %v1551, 0
        %1578 = vmatprep.subr.bf16.mxu0 0
        %1579 = vmatpush1.bf16.msra.mxu0 0
        %1580 = vmatprep.subr.bf16.mxu0 0
        %1581 = vmatpush1.bf16.msra.mxu0 0
        %1582 = vmatprep.subr.bf16.mxu0 0
        %1583 = vmatpush1.bf16.msra.mxu0 0
        %1584 = vmatprep.subr.bf16.mxu0 0
        %1585 = vmatpush1.bf16.msra.mxu0 0
        %1586 = vmatprep.subr.bf16.mxu0 0
        %1587 = vmatpush1.bf16.msra.mxu0 0
        %1588 = vmatprep.subr.bf16.mxu0 0
        %1589 = vmatpush1.bf16.msra.mxu0 0
        %1590 = vmatprep.subr.bf16.mxu0 0
        %1591 = vmatpush1.bf16.msra.mxu0 %v1572
        %1592 = vmatprep.subr.bf16.mxu0 0
        %1593 = vmatpush1.bf16.msra.mxu0 %v1571
        %1594 = vmatprep.subr.bf16.mxu0 0
        %1595 = vmatpush2.bf16.msra.mxu0 0
        %1596 = vmatprep.subr.bf16.mxu0 0
        %1597 = vmatpush2.bf16.msra.mxu0 0
        %1598 = vmatprep.subr.bf16.mxu0 0
        %1599 = vmatpush2.bf16.msra.mxu0 0
        %1600 = vmatprep.subr.bf16.mxu0 0
        %1601 = vmatpush2.bf16.msra.mxu0 0
        %1602 = vmatprep.subr.bf16.mxu0 0
        %1603 = vmatpush2.bf16.msra.mxu0 0
        %1604 = vmatprep.subr.bf16.mxu0 0
        %1605 = vmatpush2.bf16.msra.mxu0 0
        %1606 = vmatprep.subr.bf16.mxu0 0
        %1607 = vmatpush2.bf16.msra.mxu0 0
        %1608 = vmatprep.subr.bf16.mxu0 0
        %1609 = vmatpush2.bf16.msra.mxu0 0
        %1610 = vmatprep.mubr.bf16.mxu0 0
        %1611 = vmatmul.mubr.bf16.gmra.mxu0 %v1576
        %v1612 = vpop.f32.mrf.mxu0
        %v1613 = vadd.f32 %v1561, %v1612
        %v1614 = vpop.f32.mrf.mxu0
        %v1615 = vpop.f32.mrf.mxu0
        %v1616 = vpop.f32.mrf.mxu0
        %1617 = vdwg.mxu0
        %1618 = vst [vmem:[%s720] sm:$0xff] %v1613
      $region92: #{transformer_forward.1} parent=83 // pred_fallthru
        _
      %p1619 = scmp.lt.s32.totalorder %s31, 1
      %s1620 = scalar_select %p1619, %s31, 1
      %s1621 = smul.addr %s1620, 8
      %s1622 = scalar_lea.vmem %s16, %s1621
      // Predicated region
      $region93: #{transformer_forward.1} parent=83 // pred_check
        %p1623 = pneg %p458
      $region94: #{transformer_forward.1} parent=83 // pred_check_branch
        %1625 = sbr.rel (%p1623) target = $region96
      $region95: #{transformer_forward.1} parent=83 // pred_region
        _
      $region96: #{transformer_forward.1} parent=83 // pred_fallthru
        _
    $region84: #{transformer_forward.1} parent=5 // pred_fallthru
      _
    %p1626 = scmp.le.s32.totalorder 2, %s22
    // Predicated region
    $region97: #{transformer_forward.1} parent=5 // pred_check
      %p1627 = pneg %p1626
    $region98: #{transformer_forward.1} parent=5 // pred_check_branch
      %1629 = sbr.rel (%p1627) target = $region100
    $region99: #{transformer_forward.1} parent=5 // pred_region
      %s1630 = ssub.s32 %s22, 2
      // Predicated region
      $region101: #{transformer_forward.1} parent=99 // pred_check
        %p1631 = pneg %p464
      $region102: #{transformer_forward.1} parent=99 // pred_check_branch
        %1633 = sbr.rel (%p1631) target = $region104
      $region103: #{transformer_forward.1} parent=99 // pred_region
        %p1634 = scmp.lt.s32.totalorder %s33, 1
        %s1635 = scalar_select %p1634, %s33, 1
        %s1636 = smul.addr %s1635, 8
        %s1637 = scalar_lea.vmem %s16, %s1636
      $region104: #{transformer_forward.1} parent=99 // pred_fallthru
        _
    $region100: #{transformer_forward.1} parent=5 // pred_fallthru
      _
  $region6: #{transformer_forward.1} parent=0 // loop_footer
    %s26 = sadd.s32 1, %s22
  $region7: #{transformer_forward.1} parent=0 // loop_footer_branch
    %21 = sbr.rel target = $region3
  $region8: #{transformer_forward.1} parent=0 // loop_exit
    _

</llo_original>
